<compile_context>
chip_gen: v6e
topology: v6e:2x2x1
jax: 0.10.0
libtpu: 0.0.40
codegen_flags: <defaults>
</compile_context>

<pallas_src>
import jax
import jax.numpy as jnp
from jax.experimental import pallas as pl
from jax.experimental.pallas import tpu as pltpu


def _disc_kernel(x_ref, w1_ref, b1_ref, w2_ref, b2_ref, w3_ref, b3_ref,
                 w4_ref, b4_ref, o_ref):
    """Full discriminator MLP for one batch tile; all compute in-kernel."""

    def leaky(h):  # nn.LeakyReLU() default negative_slope = 0.01
        return jnp.where(h > 0, h, 0.01 * h)

    # Layer 1: [tm, K] bf16 @ [K, 1024] bf16 -> f32 accumulation on the MXU.
    h1 = leaky(jnp.dot(x_ref[...], w1_ref[...],
                       preferred_element_type=jnp.float32) + b1_ref[...])
    # Layer 2: 1024 -> 128 (re-cast the f32 activation to bf16 for the MXU).
    h2 = leaky(jnp.dot(h1.astype(jnp.bfloat16), w2_ref[...],
                       preferred_element_type=jnp.float32) + b2_ref[...])
    # Layer 3: 128 -> 16.
    h3 = leaky(jnp.dot(h2.astype(jnp.bfloat16), w3_ref[...],
                       preferred_element_type=jnp.float32) + b3_ref[...])
    # Layer 4: 16 -> 1 as broadcast-mul + 16-lane reduce (XLU); f32 throughout.
    logits = jnp.sum(h3 * w4_ref[...], axis=1, keepdims=True) + b4_ref[...]
    # Sigmoid (exp on the EUP; the divide is on a tiny (tm,1) tensor).
    o_ref[...] = (1.0 / (1.0 + jnp.exp(-logits))).astype(o_ref.dtype)


def _default_tm(batch):
    """Largest multiple-of-8 tile (<=256) dividing batch that leaves >= 2 grid
    steps (keeps both v7x TensorCores busy); otherwise take the whole batch."""
    best = None
    for tm in range(8, min(batch // 2, 256) + 1, 8):
        if batch % tm == 0:
            best = tm
    return best if best is not None else batch


def _vmem_limit_bytes(item_count, tm):
    """Explicit VMEM budget: (double-buffered) bf16 weights + f32 biases +
    x tiles + f32 activations, with slack; capped below v7x's 64 MiB physical."""
    weights = 2 * 2 * (item_count * 1024 + 1024 * 128 + 128 * 16)   # bf16, x2 buffers
    biases = 2 * 4 * (1024 + 128 + 16 + 16 + 1)
    tiles = 2 * (2 * tm * item_count + 4 * tm)
    acts = 4 * tm * (1024 + 128 + 16 + 1)
    total = weights + biases + tiles + 4 * acts
    return int(min(max(total, 8 << 20), 48 << 20))


def discriminator_forward(x, params, *, tm=None):
    """x: [batch, itemCount] float32 -> [batch, 1] float32."""
    w1, b1, w2, b2, w3, b3, w4, b4 = params
    batch, item_count = x.shape
    if tm is None:
        tm = _default_tm(batch)
    assert batch % tm == 0, "batch must be divisible by the batch tile tm"
    n_tiles = batch // tm

    # bf16 MXU operands (cast once here, outside the kernel; in production the
    # weights would simply be stored in bf16). Biases / final layer stay f32.
    x_b = x.astype(jnp.bfloat16)
    w1b = w1.astype(jnp.bfloat16)
    w2b = w2.astype(jnp.bfloat16)
    w3b = w3.astype(jnp.bfloat16)
    b1_2d = b1.reshape(1, 1024).astype(jnp.float32)
    b2_2d = b2.reshape(1, 128).astype(jnp.float32)
    b3_2d = b3.reshape(1, 16).astype(jnp.float32)
    w4_row = w4.reshape(1, 16).astype(jnp.float32)
    b4_2d = b4.reshape(1, 1).astype(jnp.float32)

    full = lambda i: (0, 0)  # weights/biases: same full block every grid step

    out = pl.pallas_call(
        _disc_kernel,
        out_shape=jax.ShapeDtypeStruct((batch, 1), jnp.float32),
        grid_spec=pltpu.PrefetchScalarGridSpec(
            num_scalar_prefetch=0,
            grid=(n_tiles,),
            in_specs=[
                pl.BlockSpec((tm, item_count), lambda i: (i, 0)),   # x tile (bf16)
                pl.BlockSpec((item_count, 1024), full),             # W1 (bf16)
                pl.BlockSpec((1, 1024), full),                      # b1 (f32)
                pl.BlockSpec((1024, 128), full),                    # W2 (bf16)
                pl.BlockSpec((1, 128), full),                       # b2 (f32)
                pl.BlockSpec((128, 16), full),                      # W3 (bf16)
                pl.BlockSpec((1, 16), full),                        # b3 (f32)
                pl.BlockSpec((1, 16), full),                        # W4 as a row (f32)
                pl.BlockSpec((1, 1), full),                         # b4 (f32)
            ],
            out_specs=pl.BlockSpec((tm, 1), lambda i: (i, 0)),
        ),
        compiler_params=pltpu.CompilerParams(
            dimension_semantics=("parallel",),
            vmem_limit_bytes=_vmem_limit_bytes(item_count, tm),
        ),
    )(x_b, w1b, b1_2d, w2b, b2_2d, w3b, b3_2d, w4_row, b4_2d)

    return out


def init_params(key, item_count):
    """Deterministic synthetic init; weights stored as [in, out], all f32."""
    ks = jax.random.split(key, 8)
    scale = 0.05
    w1 = scale * jax.random.normal(ks[0], (item_count, 1024), jnp.float32)
    b1 = scale * jax.random.normal(ks[1], (1024,), jnp.float32)
    w2 = scale * jax.random.normal(ks[2], (1024, 128), jnp.float32)
    b2 = scale * jax.random.normal(ks[3], (128,), jnp.float32)
    w3 = scale * jax.random.normal(ks[4], (128, 16), jnp.float32)
    b3 = scale * jax.random.normal(ks[5], (16,), jnp.float32)
    w4 = scale * jax.random.normal(ks[6], (16, 1), jnp.float32)
    b4 = scale * jax.random.normal(ks[7], (1,), jnp.float32)
    return (w1, b1, w2, b2, w3, b3, w4, b4)


def reference_forward(x, params):
    """Pure f32 reference matching the PyTorch module."""
    w1, b1, w2, b2, w3, b3, w4, b4 = params
    leaky = lambda h: jnp.where(h > 0, h, 0.01 * h)
    h = leaky(x @ w1 + b1)
    h = leaky(h @ w2 + b2)
    h = leaky(h @ w3 + b3)
    return jax.nn.sigmoid(h @ w4 + b4)


def reference_forward_bf16(x, params):
    """Same math but with MXU operands rounded to bf16 exactly like the kernel."""
    w1, b1, w2, b2, w3, b3, w4, b4 = params
    r = lambda a: a.astype(jnp.bfloat16).astype(jnp.float32)
    leaky = lambda h: jnp.where(h > 0, h, 0.01 * h)
    h = leaky(r(x) @ r(w1) + b1)
    h = leaky(r(h) @ r(w2) + b2)
    h = leaky(r(h) @ r(w3) + b3)
    return jax.nn.sigmoid(h @ w4 + b4)


if __name__ == "__main__":
    key = jax.random.PRNGKey(0)
    item_count = 64
    batch = 32  # _default_tm -> tm=16, grid of 2 parallel steps

    kx, kp = jax.random.split(key)
    x = jax.random.normal(kx, (batch, item_count), jnp.float32)
    params = init_params(kp, item_count)

    out = jax.block_until_ready(discriminator_forward(x, params))
    assert out.shape == (batch, 1)

    # Structural check against an f32 reference with the same bf16-rounded
    # operands, plus a looser check against the pure-f32 module semantics.
    ref_bf16 = reference_forward_bf16(x, params)
    assert jnp.allclose(out, ref_bf16, atol=1e-2, rtol=0.0), "mismatch vs bf16-matched reference"
    ref_f32 = reference_forward(x, params)
    assert jnp.allclose(out, ref_f32, atol=3e-2, rtol=0.0), "mismatch vs f32 reference"

    print("KERNEL_OK")
</pallas_src>

<mosaic_0001>
module attributes {stable_mosaic.version = 11 : i64} {
  func.func @_disc_kernel(%arg0: i32, %arg1: memref<16x64xbf16, #tpu.memory_space<vmem>>, %arg2: memref<64x1024xbf16, #tpu.memory_space<vmem>>, %arg3: memref<1x1024xf32, #tpu.memory_space<vmem>>, %arg4: memref<1024x128xbf16, #tpu.memory_space<vmem>>, %arg5: memref<1x128xf32, #tpu.memory_space<vmem>>, %arg6: memref<128x16xbf16, #tpu.memory_space<vmem>>, %arg7: memref<1x16xf32, #tpu.memory_space<vmem>>, %arg8: memref<1x16xf32, #tpu.memory_space<vmem>>, %arg9: memref<1x1xf32, #tpu.memory_space<vmem>>, %arg10: memref<16x1xf32, #tpu.memory_space<vmem>>) attributes {dimension_semantics = [#tpu.dimension_semantics<parallel>], iteration_bounds = array<i64: 2>, scalar_prefetch = 0 : i64, scratch_operands = 0 : i64, tpu.core_type = #tpu.core_type<tc>, window_params = [{transform_indices = @transform_0, window_bounds = array<i64: 16, 64>}, {pipeline_mode = #tpu.pipeline_mode<synchronous>, transform_indices = @transform_1, window_bounds = array<i64: 64, 1024>}, {pipeline_mode = #tpu.pipeline_mode<synchronous>, transform_indices = @transform_2, window_bounds = array<i64: 1, 1024>}, {pipeline_mode = #tpu.pipeline_mode<synchronous>, transform_indices = @transform_3, window_bounds = array<i64: 1024, 128>}, {pipeline_mode = #tpu.pipeline_mode<synchronous>, transform_indices = @transform_4, window_bounds = array<i64: 1, 128>}, {pipeline_mode = #tpu.pipeline_mode<synchronous>, transform_indices = @transform_5, window_bounds = array<i64: 128, 16>}, {pipeline_mode = #tpu.pipeline_mode<synchronous>, transform_indices = @transform_6, window_bounds = array<i64: 1, 16>}, {pipeline_mode = #tpu.pipeline_mode<synchronous>, transform_indices = @transform_7, window_bounds = array<i64: 1, 16>}, {pipeline_mode = #tpu.pipeline_mode<synchronous>, transform_indices = @transform_8, window_bounds = array<i64: 1, 1>}, {transform_indices = @transform_9, window_bounds = array<i64: 16, 1>}]} {
    %c0 = arith.constant 0 : index
    %c0_0 = arith.constant 0 : index
    %0 = vector.load %arg1[%c0, %c0_0] : memref<16x64xbf16, #tpu.memory_space<vmem>>, vector<16x64xbf16>
    %c0_1 = arith.constant 0 : index
    %c0_2 = arith.constant 0 : index
    %1 = vector.load %arg2[%c0_1, %c0_2] : memref<64x1024xbf16, #tpu.memory_space<vmem>>, vector<64x1024xbf16>
    %cst = arith.constant dense<0.000000e+00> : vector<16x1024xf32>
    %2 = tpu.matmul %0, %1, %cst {dimension_numbers = #tpu.dot_dimension_numbers<[1], [0], [0], [1], [0, 0, 1, 1], [], []>} : vector<16x64xbf16>, vector<64x1024xbf16>, vector<16x1024xf32> -> vector<16x1024xf32>
    %c0_3 = arith.constant 0 : index
    %c0_4 = arith.constant 0 : index
    %3 = vector.load %arg3[%c0_3, %c0_4] : memref<1x1024xf32, #tpu.memory_space<vmem>>, vector<1x1024xf32>
    %4 = vector.broadcast %3 : vector<1x1024xf32> to vector<16x1024xf32>
    %5 = arith.addf %2, %4 : vector<16x1024xf32>
    %cst_5 = arith.constant 0.000000e+00 : f32
    %6 = vector.broadcast %cst_5 : f32 to vector<16x1024xf32>
    %7 = arith.cmpf ogt, %5, %6 : vector<16x1024xf32>
    %cst_6 = arith.constant 0.00999999977 : f32
    %8 = vector.broadcast %cst_6 : f32 to vector<16x1024xf32>
    %9 = arith.mulf %8, %5 : vector<16x1024xf32>
    %10 = arith.select %7, %5, %9 : vector<16x1024xi1>, vector<16x1024xf32>
    %11 = arith.truncf %10 : vector<16x1024xf32> to vector<16x1024xbf16>
    %c0_7 = arith.constant 0 : index
    %c0_8 = arith.constant 0 : index
    %12 = vector.load %arg4[%c0_7, %c0_8] : memref<1024x128xbf16, #tpu.memory_space<vmem>>, vector<1024x128xbf16>
    %cst_9 = arith.constant dense<0.000000e+00> : vector<16x128xf32>
    %13 = tpu.matmul %11, %12, %cst_9 {dimension_numbers = #tpu.dot_dimension_numbers<[1], [0], [0], [1], [0, 0, 1, 1], [], []>} : vector<16x1024xbf16>, vector<1024x128xbf16>, vector<16x128xf32> -> vector<16x128xf32>
    %c0_10 = arith.constant 0 : index
    %c0_11 = arith.constant 0 : index
    %14 = vector.load %arg5[%c0_10, %c0_11] : memref<1x128xf32, #tpu.memory_space<vmem>>, vector<1x128xf32>
    %15 = vector.broadcast %14 : vector<1x128xf32> to vector<16x128xf32>
    %16 = arith.addf %13, %15 : vector<16x128xf32>
    %cst_12 = arith.constant 0.000000e+00 : f32
    %17 = vector.broadcast %cst_12 : f32 to vector<16x128xf32>
    %18 = arith.cmpf ogt, %16, %17 : vector<16x128xf32>
    %cst_13 = arith.constant 0.00999999977 : f32
    %19 = vector.broadcast %cst_13 : f32 to vector<16x128xf32>
    %20 = arith.mulf %19, %16 : vector<16x128xf32>
    %21 = arith.select %18, %16, %20 : vector<16x128xi1>, vector<16x128xf32>
    %22 = arith.truncf %21 : vector<16x128xf32> to vector<16x128xbf16>
    %c0_14 = arith.constant 0 : index
    %c0_15 = arith.constant 0 : index
    %23 = vector.load %arg6[%c0_14, %c0_15] : memref<128x16xbf16, #tpu.memory_space<vmem>>, vector<128x16xbf16>
    %cst_16 = arith.constant dense<0.000000e+00> : vector<16x16xf32>
    %24 = tpu.matmul %22, %23, %cst_16 {dimension_numbers = #tpu.dot_dimension_numbers<[1], [0], [0], [1], [0, 0, 1, 1], [], []>} : vector<16x128xbf16>, vector<128x16xbf16>, vector<16x16xf32> -> vector<16x16xf32>
    %c0_17 = arith.constant 0 : index
    %c0_18 = arith.constant 0 : index
    %25 = vector.load %arg7[%c0_17, %c0_18] : memref<1x16xf32, #tpu.memory_space<vmem>>, vector<1x16xf32>
    %26 = vector.broadcast %25 : vector<1x16xf32> to vector<16x16xf32>
    %27 = arith.addf %24, %26 : vector<16x16xf32>
    %cst_19 = arith.constant 0.000000e+00 : f32
    %28 = vector.broadcast %cst_19 : f32 to vector<16x16xf32>
    %29 = arith.cmpf ogt, %27, %28 : vector<16x16xf32>
    %cst_20 = arith.constant 0.00999999977 : f32
    %30 = vector.broadcast %cst_20 : f32 to vector<16x16xf32>
    %31 = arith.mulf %30, %27 : vector<16x16xf32>
    %32 = arith.select %29, %27, %31 : vector<16x16xi1>, vector<16x16xf32>
    %c0_21 = arith.constant 0 : index
    %c0_22 = arith.constant 0 : index
    %33 = vector.load %arg8[%c0_21, %c0_22] : memref<1x16xf32, #tpu.memory_space<vmem>>, vector<1x16xf32>
    %34 = vector.broadcast %33 : vector<1x16xf32> to vector<16x16xf32>
    %35 = arith.mulf %32, %34 : vector<16x16xf32>
    %cst_23 = arith.constant dense<0.000000e+00> : vector<16xf32>
    %36 = vector.multi_reduction <add>, %35, %cst_23 [1] : vector<16x16xf32> to vector<16xf32>
    %37 = vector.shape_cast %36 : vector<16xf32> to vector<16x1xf32>
    %c0_24 = arith.constant 0 : index
    %c0_25 = arith.constant 0 : index
    %38 = vector.load %arg9[%c0_24, %c0_25] : memref<1x1xf32, #tpu.memory_space<vmem>>, vector<1x1xf32>
    %39 = vector.broadcast %38 : vector<1x1xf32> to vector<16x1xf32>
    %40 = arith.addf %37, %39 : vector<16x1xf32>
    %cst_26 = arith.constant 0.000000e+00 : f32
    %41 = vector.broadcast %cst_26 : f32 to vector<16x1xf32>
    %42 = arith.subf %41, %40 : vector<16x1xf32>
    %43 = math.exp %42 : vector<16x1xf32>
    %cst_27 = arith.constant 1.000000e+00 : f32
    %44 = vector.broadcast %cst_27 : f32 to vector<16x1xf32>
    %45 = arith.addf %44, %43 : vector<16x1xf32>
    %cst_28 = arith.constant 1.000000e+00 : f32
    %46 = vector.broadcast %cst_28 : f32 to vector<16x1xf32>
    %47 = arith.divf %46, %45 : vector<16x1xf32>
    %c0_29 = arith.constant 0 : index
    %c0_30 = arith.constant 0 : index
    %48 = vector.load %arg10[%c0_29, %c0_30] : memref<16x1xf32, #tpu.memory_space<vmem>>, vector<16x1xf32>
    tpu.vector_store %arg10[%c0_29, %c0_30], %47 {strides = array<i32>} : memref<16x1xf32, #tpu.memory_space<vmem>>, vector<16x1xf32>,
    return
  }
  func.func @transform_0(%arg0: i32) -> (i32, i32) {
    %c0_i32 = arith.constant 0 : i32
    %c0_i32_0 = arith.constant 0 : i32
    return %arg0, %c0_i32 : i32, i32
  }
  func.func @transform_1(%arg0: i32) -> (i32, i32) {
    %c0_i32 = arith.constant 0 : i32
    %c0_i32_0 = arith.constant 0 : i32
    %c0_i32_1 = arith.constant 0 : i32
    return %c0_i32, %c0_i32_0 : i32, i32
  }
  func.func @transform_2(%arg0: i32) -> (i32, i32) {
    %c0_i32 = arith.constant 0 : i32
    %c0_i32_0 = arith.constant 0 : i32
    %c0_i32_1 = arith.constant 0 : i32
    return %c0_i32, %c0_i32_0 : i32, i32
  }
  func.func @transform_3(%arg0: i32) -> (i32, i32) {
    %c0_i32 = arith.constant 0 : i32
    %c0_i32_0 = arith.constant 0 : i32
    %c0_i32_1 = arith.constant 0 : i32
    return %c0_i32, %c0_i32_0 : i32, i32
  }
  func.func @transform_4(%arg0: i32) -> (i32, i32) {
    %c0_i32 = arith.constant 0 : i32
    %c0_i32_0 = arith.constant 0 : i32
    %c0_i32_1 = arith.constant 0 : i32
    return %c0_i32, %c0_i32_0 : i32, i32
  }
  func.func @transform_5(%arg0: i32) -> (i32, i32) {
    %c0_i32 = arith.constant 0 : i32
    %c0_i32_0 = arith.constant 0 : i32
    %c0_i32_1 = arith.constant 0 : i32
    return %c0_i32, %c0_i32_0 : i32, i32
  }
  func.func @transform_6(%arg0: i32) -> (i32, i32) {
    %c0_i32 = arith.constant 0 : i32
    %c0_i32_0 = arith.constant 0 : i32
    %c0_i32_1 = arith.constant 0 : i32
    return %c0_i32, %c0_i32_0 : i32, i32
  }
  func.func @transform_7(%arg0: i32) -> (i32, i32) {
    %c0_i32 = arith.constant 0 : i32
    %c0_i32_0 = arith.constant 0 : i32
    %c0_i32_1 = arith.constant 0 : i32
    return %c0_i32, %c0_i32_0 : i32, i32
  }
  func.func @transform_8(%arg0: i32) -> (i32, i32) {
    %c0_i32 = arith.constant 0 : i32
    %c0_i32_0 = arith.constant 0 : i32
    %c0_i32_1 = arith.constant 0 : i32
    return %c0_i32, %c0_i32_0 : i32, i32
  }
  func.func @transform_9(%arg0: i32) -> (i32, i32) {
    %c0_i32 = arith.constant 0 : i32
    %c0_i32_0 = arith.constant 0 : i32
    return %arg0, %c0_i32 : i32, i32
  }
}

</mosaic_0001>

<llo_original>
// kernel: tpu_custom_call.1
$region0: #{tpu_custom_call.1}
  #allocation0 [shape = 'u32[]', space=smem, size = 0x4, offset = 0x4, fixed_abs, tag = 'smem constant byte address 0x4 - core index']
  #allocation1 [shape = 'u32[144,128]{1,0:T(1,128)}', space=vmem, size = 0x12000, scoped, tag = 'internal scratch']
  #allocation2 [shape = 'f32[1,1]{1,0:T(1,128)S(1)}', space=vmem, size = 0x200, scoped, tag = 'scoped memory for tpu_custom_call.1']
  %s0 = inlined_call_operand.vmem [shape: bf16[32,64], index: 0, kind: input, shape index: {}]
  %s1 = inlined_call_operand.hbm [shape: bf16[64,1024], index: 1, kind: input, shape index: {}]
  %s2 = inlined_call_operand.vmem [shape: f32[1,1024], index: 2, kind: input, shape index: {}]
  %s3 = inlined_call_operand.hbm [shape: bf16[1024,128], index: 3, kind: input, shape index: {}]
  %s4 = inlined_call_operand.vmem [shape: f32[1,128], index: 4, kind: input, shape index: {}]
  %s5 = inlined_call_operand.vmem [shape: bf16[128,16], index: 5, kind: input, shape index: {}]
  %s6 = inlined_call_operand.vmem [shape: f32[1,16], index: 6, kind: input, shape index: {}]
  %s7 = inlined_call_operand.vmem [shape: f32[1,16], index: 7, kind: input, shape index: {}]
  %s8 = inlined_call_operand.<no memory space> [shape: f32[1,1], index: 8, kind: input, shape index: {}]
  %s9 = inlined_call_operand.vmem [shape: f32[32,1], index: 9, kind: output, shape index: {}]
  %s10 = sld [smem:[#allocation0]]
  $region77: #{tpu_custom_call.1} parent=0
    _
  %s12 = ssub.s32 1, %s10
  %s13 = scalar_select 0, %s12, %s10
  %v14 = vstv %s8
  %15 = vst [vmem:[#allocation2] sm:$0x1] %v14
  $region1: #{tpu_custom_call.1} parent=0
    #allocation3 [shape = 'u8[131072]{0}', space=vmem, size = 0x20000, scoped, tag = 'input window, operand 1, single buffered']
    #allocation4 [shape = 's32[2]{0}', space=sflag, size = 0x8, scoped, tag = 'scoped memory for tpu_custom_call.1']
    #allocation5 [shape = 'u8[262144]{0}', space=vmem, size = 0x40000, scoped, tag = 'input window, operand 3, single buffered']
    #allocation6 [shape = 's32[1]{0}', space=sflag, size = 0x4, scoped, tag = 'scoped memory for tpu_custom_call.1']
    %16 = vsyncpa [#allocation4], 0
    %17 = vsyncpa [#allocation6], 0
    loop: start=0, step=1, limit=4
    $region2: #{tpu_custom_call.1} parent=1 // loop_pre_header
      _
    $region3: #{tpu_custom_call.1} parent=1 // loop_header
      %s19 = sphi 0, %s23
      %p20 = scmp.ge.s32.totalorder %s19, 4
      %s29 = sphi 0, %s31
      %s32 = sphi 0, %s29
      %s33 = sphi 0, %s32
      %s49 = sphi 0, %s33
      %s53 = sphi 0, %s53
      %s55 = sphi 0, %s53
      %s56 = sphi 0, %s55
      %s70 = sphi 0, %s56
      %s74 = sphi 0, %s74
      %s76 = sphi 0, %s74
      %s77 = sphi 0, %s76
      %s91 = sphi 0, %s77
      %s95 = sphi 0, %s95
      %s97 = sphi 0, %s95
      %s98 = sphi 0, %s97
      %s112 = sphi 0, %s98
      %s116 = sphi 0, %s116
      %s118 = sphi 0, %s116
      %s119 = sphi 0, %s118
      %s133 = sphi 0, %s119
      %s137 = sphi 0, %s137
      %s139 = sphi 0, %s137
      %s140 = sphi 0, %s139
      %s154 = sphi 0, %s140
      %s158 = sphi 0, %s158
      %s160 = sphi 0, %s158
      %s161 = sphi 0, %s160
      %s175 = sphi 0, %s161
      %s179 = sphi 0, %s179
      %s181 = sphi 0, %s179
      %s182 = sphi 0, %s181
      %s196 = sphi 0, %s182
      %s200 = sphi 0, %s200
      %s202 = sphi 0, %s200
      %s203 = sphi 0, %s202
      %s217 = sphi 0, %s203
      %s223 = sphi 0, %s225
      %s226 = sphi 0, %s223
      %s227 = sphi 0, %s226
      %s243 = sphi 0, %s227
    $region4: #{tpu_custom_call.1} parent=1 // loop_header_branch
      %22 = sbr.rel (%p20) target = $region8
    $region5: #{tpu_custom_call.1} parent=1 // loop_body
      %s24 = ssub.s32 %s19, 1
      %s25 = ssub.s32 %s19, 2
      %s26 = sadd.s32 %s19, 1
      %s27 = ssub.s32 %s19, %s26
      %p28 = scmp.eq.s32.totalorder %s27, 0
      %s30 = sadd.s32 %s29, 1
      %s31 = scalar_select %p28, %s29, %s30
      %p34 = pneg %p28
      %p35 = scmp.eq.s32.totalorder %s19, 1
      %p36 = por %p34, %p35
      %p37 = scmp.ne.s32.totalorder %s29, %s32
      %p38 = scmp.eq.s32.totalorder %s19, 0
      %p39 = por %p37, %p38
      %p40 = scmp.ne.s32.totalorder %s29, %s32
      %p41 = scmp.eq.s32.totalorder %s24, 1
      %p42 = por %p40, %p41
      %p43 = scmp.ne.s32.totalorder %s32, %s33
      %p44 = scmp.eq.s32.totalorder %s24, 0
      %p45 = por %p43, %p44
      %p46 = scmp.ne.s32.totalorder %s32, %s33
      %p47 = scmp.eq.s32.totalorder %s25, 1
      %p48 = por %p46, %p47
      %p50 = scmp.ne.s32.totalorder %s33, %s49
      %p51 = scmp.eq.s32.totalorder %s25, 0
      %p52 = por %p50, %p51
      %s54 = sadd.s32 %s53, 1
      %p57 = scmp.eq.s32.totalorder %s19, 1
      %p58 = scmp.ne.s32.totalorder %s53, %s55
      %p59 = scmp.eq.s32.totalorder %s19, 0
      %p60 = por %p58, %p59
      %p61 = scmp.ne.s32.totalorder %s53, %s55
      %p62 = scmp.eq.s32.totalorder %s24, 1
      %p63 = por %p61, %p62
      %p64 = scmp.ne.s32.totalorder %s55, %s56
      %p65 = scmp.eq.s32.totalorder %s24, 0
      %p66 = por %p64, %p65
      %p67 = scmp.ne.s32.totalorder %s55, %s56
      %p68 = scmp.eq.s32.totalorder %s25, 1
      %p69 = por %p67, %p68
      %p71 = scmp.ne.s32.totalorder %s56, %s70
      %p72 = scmp.eq.s32.totalorder %s25, 0
      %p73 = por %p71, %p72
      %s75 = sadd.s32 %s74, 1
      %p78 = scmp.eq.s32.totalorder %s19, 1
      %p79 = scmp.ne.s32.totalorder %s74, %s76
      %p80 = scmp.eq.s32.totalorder %s19, 0
      %p81 = por %p79, %p80
      %p82 = scmp.ne.s32.totalorder %s74, %s76
      %p83 = scmp.eq.s32.totalorder %s24, 1
      %p84 = por %p82, %p83
      %p85 = scmp.ne.s32.totalorder %s76, %s77
      %p86 = scmp.eq.s32.totalorder %s24, 0
      %p87 = por %p85, %p86
      %p88 = scmp.ne.s32.totalorder %s76, %s77
      %p89 = scmp.eq.s32.totalorder %s25, 1
      %p90 = por %p88, %p89
      %p92 = scmp.ne.s32.totalorder %s77, %s91
      %p93 = scmp.eq.s32.totalorder %s25, 0
      %p94 = por %p92, %p93
      %s96 = sadd.s32 %s95, 1
      %p99 = scmp.eq.s32.totalorder %s19, 1
      %p100 = scmp.ne.s32.totalorder %s95, %s97
      %p101 = scmp.eq.s32.totalorder %s19, 0
      %p102 = por %p100, %p101
      %p103 = scmp.ne.s32.totalorder %s95, %s97
      %p104 = scmp.eq.s32.totalorder %s24, 1
      %p105 = por %p103, %p104
      %p106 = scmp.ne.s32.totalorder %s97, %s98
      %p107 = scmp.eq.s32.totalorder %s24, 0
      %p108 = por %p106, %p107
      %p109 = scmp.ne.s32.totalorder %s97, %s98
      %p110 = scmp.eq.s32.totalorder %s25, 1
      %p111 = por %p109, %p110
      %p113 = scmp.ne.s32.totalorder %s98, %s112
      %p114 = scmp.eq.s32.totalorder %s25, 0
      %p115 = por %p113, %p114
      %s117 = sadd.s32 %s116, 1
      %p120 = scmp.eq.s32.totalorder %s19, 1
      %p121 = scmp.ne.s32.totalorder %s116, %s118
      %p122 = scmp.eq.s32.totalorder %s19, 0
      %p123 = por %p121, %p122
      %p124 = scmp.ne.s32.totalorder %s116, %s118
      %p125 = scmp.eq.s32.totalorder %s24, 1
      %p126 = por %p124, %p125
      %p127 = scmp.ne.s32.totalorder %s118, %s119
      %p128 = scmp.eq.s32.totalorder %s24, 0
      %p129 = por %p127, %p128
      %p130 = scmp.ne.s32.totalorder %s118, %s119
      %p131 = scmp.eq.s32.totalorder %s25, 1
      %p132 = por %p130, %p131
      %p134 = scmp.ne.s32.totalorder %s119, %s133
      %p135 = scmp.eq.s32.totalorder %s25, 0
      %p136 = por %p134, %p135
      %s138 = sadd.s32 %s137, 1
      %p141 = scmp.eq.s32.totalorder %s19, 1
      %p142 = scmp.ne.s32.totalorder %s137, %s139
      %p143 = scmp.eq.s32.totalorder %s19, 0
      %p144 = por %p142, %p143
      %p145 = scmp.ne.s32.totalorder %s137, %s139
      %p146 = scmp.eq.s32.totalorder %s24, 1
      %p147 = por %p145, %p146
      %p148 = scmp.ne.s32.totalorder %s139, %s140
      %p149 = scmp.eq.s32.totalorder %s24, 0
      %p150 = por %p148, %p149
      %p151 = scmp.ne.s32.totalorder %s139, %s140
      %p152 = scmp.eq.s32.totalorder %s25, 1
      %p153 = por %p151, %p152
      %p155 = scmp.ne.s32.totalorder %s140, %s154
      %p156 = scmp.eq.s32.totalorder %s25, 0
      %p157 = por %p155, %p156
      %s159 = sadd.s32 %s158, 1
      %p162 = scmp.eq.s32.totalorder %s19, 1
      %p163 = scmp.ne.s32.totalorder %s158, %s160
      %p164 = scmp.eq.s32.totalorder %s19, 0
      %p165 = por %p163, %p164
      %p166 = scmp.ne.s32.totalorder %s158, %s160
      %p167 = scmp.eq.s32.totalorder %s24, 1
      %p168 = por %p166, %p167
      %p169 = scmp.ne.s32.totalorder %s160, %s161
      %p170 = scmp.eq.s32.totalorder %s24, 0
      %p171 = por %p169, %p170
      %p172 = scmp.ne.s32.totalorder %s160, %s161
      %p173 = scmp.eq.s32.totalorder %s25, 1
      %p174 = por %p172, %p173
      %p176 = scmp.ne.s32.totalorder %s161, %s175
      %p177 = scmp.eq.s32.totalorder %s25, 0
      %p178 = por %p176, %p177
      %s180 = sadd.s32 %s179, 1
      %p183 = scmp.eq.s32.totalorder %s19, 1
      %p184 = scmp.ne.s32.totalorder %s179, %s181
      %p185 = scmp.eq.s32.totalorder %s19, 0
      %p186 = por %p184, %p185
      %p187 = scmp.ne.s32.totalorder %s179, %s181
      %p188 = scmp.eq.s32.totalorder %s24, 1
      %p189 = por %p187, %p188
      %p190 = scmp.ne.s32.totalorder %s181, %s182
      %p191 = scmp.eq.s32.totalorder %s24, 0
      %p192 = por %p190, %p191
      %p193 = scmp.ne.s32.totalorder %s181, %s182
      %p194 = scmp.eq.s32.totalorder %s25, 1
      %p195 = por %p193, %p194
      %p197 = scmp.ne.s32.totalorder %s182, %s196
      %p198 = scmp.eq.s32.totalorder %s25, 0
      %p199 = por %p197, %p198
      %s201 = sadd.s32 %s200, 1
      %p204 = scmp.eq.s32.totalorder %s19, 1
      %p205 = scmp.ne.s32.totalorder %s200, %s202
      %p206 = scmp.eq.s32.totalorder %s19, 0
      %p207 = por %p205, %p206
      %p208 = scmp.ne.s32.totalorder %s200, %s202
      %p209 = scmp.eq.s32.totalorder %s24, 1
      %p210 = por %p208, %p209
      %p211 = scmp.ne.s32.totalorder %s202, %s203
      %p212 = scmp.eq.s32.totalorder %s24, 0
      %p213 = por %p211, %p212
      %p214 = scmp.ne.s32.totalorder %s202, %s203
      %p215 = scmp.eq.s32.totalorder %s25, 1
      %p216 = por %p214, %p215
      %p218 = scmp.ne.s32.totalorder %s203, %s217
      %p219 = scmp.eq.s32.totalorder %s25, 0
      %p220 = por %p218, %p219
      %s221 = ssub.s32 %s19, %s26
      %p222 = scmp.eq.s32.totalorder %s221, 0
      %s224 = sadd.s32 %s223, 1
      %s225 = scalar_select %p222, %s223, %s224
      %p228 = pneg %p222
      %p229 = scmp.eq.s32.totalorder %s19, 1
      %p230 = por %p228, %p229
      %p231 = scmp.ne.s32.totalorder %s223, %s226
      %p232 = scmp.eq.s32.totalorder %s19, 0
      %p233 = por %p231, %p232
      %p234 = scmp.ne.s32.totalorder %s223, %s226
      %p235 = scmp.eq.s32.totalorder %s24, 1
      %p236 = por %p234, %p235
      %p237 = scmp.ne.s32.totalorder %s226, %s227
      %p238 = scmp.eq.s32.totalorder %s24, 0
      %p239 = por %p237, %p238
      %p240 = scmp.ne.s32.totalorder %s226, %s227
      %p241 = scmp.eq.s32.totalorder %s25, 1
      %p242 = por %p240, %p241
      %p244 = scmp.ne.s32.totalorder %s227, %s243
      %p245 = scmp.eq.s32.totalorder %s25, 0
      %p246 = por %p244, %p245
      %p247 = scmp.le.s32.totalorder 1, %s19
      %p248 = scmp.lt.s32.totalorder %s19, 3
      %p249 = pnand %p247, %p248
      %p250 = pneg %p249
      // Predicated region
      $region9: #{tpu_custom_call.1} parent=5 // pred_check
        _
      $region10: #{tpu_custom_call.1} parent=5 // pred_check_branch
        %252 = sbr.rel (%p249) target = $region12
      $region11: #{tpu_custom_call.1} parent=5 // pred_region
        %s253 = ssub.s32 %s19, 1
        // Predicated region
        $region13: #{tpu_custom_call.1} parent=11 // pred_check
          %p254 = pneg %p66
        $region14: #{tpu_custom_call.1} parent=11 // pred_check_branch
          %256 = sbr.rel (%p254) target = $region16
        $region15: #{tpu_custom_call.1} parent=11 // pred_region
          %s258 = ssub.s32 4096, 4096
          %259 = vsyncadd [#allocation4], %s258
          %s260 = sshll.u32 [#allocation3], 4
          %s261 = int_to_ptr.vmem [resolvable:$true] %s260
          %266 = dma.hbm_to_vmem [thread:$0]  %s1, 4096, %s261, [#allocation4], 512, 512, 32
        $region16: #{tpu_custom_call.1} parent=11 // pred_fallthru
          _
        // Predicated region
        $region17: #{tpu_custom_call.1} parent=11 // pred_check
          %p267 = pneg %p87
        $region18: #{tpu_custom_call.1} parent=11 // pred_check_branch
          %269 = sbr.rel (%p267) target = $region20
        $region19: #{tpu_custom_call.1} parent=11 // pred_region
          _
        $region20: #{tpu_custom_call.1} parent=11 // pred_fallthru
          _
        // Predicated region
        $region21: #{tpu_custom_call.1} parent=11 // pred_check
          %p270 = pneg %p108
        $region22: #{tpu_custom_call.1} parent=11 // pred_check_branch
          %272 = sbr.rel (%p270) target = $region24
        $region23: #{tpu_custom_call.1} parent=11 // pred_region
          %s274 = ssub.s32 8192, 8192
          %275 = vsyncadd [#allocation6], %s274
          %s276 = sshll.u32 [#allocation5], 4
          %s277 = int_to_ptr.vmem [resolvable:$true] %s276
          %282 = dma.hbm_to_vmem [thread:$0]  %s3, 8192, %s277, [#allocation6], 64, 64, 4
        $region24: #{tpu_custom_call.1} parent=11 // pred_fallthru
          _
        // Predicated region
        $region25: #{tpu_custom_call.1} parent=11 // pred_check
          %p283 = pneg %p129
        $region26: #{tpu_custom_call.1} parent=11 // pred_check_branch
          %285 = sbr.rel (%p283) target = $region28
        $region27: #{tpu_custom_call.1} parent=11 // pred_region
          _
        $region28: #{tpu_custom_call.1} parent=11 // pred_fallthru
          _
        // Predicated region
        $region29: #{tpu_custom_call.1} parent=11 // pred_check
          %p286 = pneg %p150
        $region30: #{tpu_custom_call.1} parent=11 // pred_check_branch
          %288 = sbr.rel (%p286) target = $region32
        $region31: #{tpu_custom_call.1} parent=11 // pred_region
          _
        $region32: #{tpu_custom_call.1} parent=11 // pred_fallthru
          _
        // Predicated region
        $region33: #{tpu_custom_call.1} parent=11 // pred_check
          %p289 = pneg %p171
        $region34: #{tpu_custom_call.1} parent=11 // pred_check_branch
          %291 = sbr.rel (%p289) target = $region36
        $region35: #{tpu_custom_call.1} parent=11 // pred_region
          _
        $region36: #{tpu_custom_call.1} parent=11 // pred_fallthru
          _
        // Predicated region
        $region37: #{tpu_custom_call.1} parent=11 // pred_check
          %p292 = pneg %p192
        $region38: #{tpu_custom_call.1} parent=11 // pred_check_branch
          %294 = sbr.rel (%p292) target = $region40
        $region39: #{tpu_custom_call.1} parent=11 // pred_region
          _
        $region40: #{tpu_custom_call.1} parent=11 // pred_fallthru
          _
        // Predicated region
        $region41: #{tpu_custom_call.1} parent=11 // pred_check
          %p295 = pneg %p213
        $region42: #{tpu_custom_call.1} parent=11 // pred_check_branch
          %297 = sbr.rel (%p295) target = $region44
        $region43: #{tpu_custom_call.1} parent=11 // pred_region
          _
        $region44: #{tpu_custom_call.1} parent=11 // pred_fallthru
          _
      $region12: #{tpu_custom_call.1} parent=5 // pred_fallthru
        _
      %p298 = scmp.lt.s32.totalorder %s19, 2
      // Predicated region
      $region45: #{tpu_custom_call.1} parent=5 // pred_check
        %p299 = pneg %p298
      $region46: #{tpu_custom_call.1} parent=5 // pred_check_branch
        %301 = sbr.rel (%p299) target = $region48
      $region47: #{tpu_custom_call.1} parent=5 // pred_region
        // Predicated region
        $region49: #{tpu_custom_call.1} parent=47 // pred_check
          %p302 = pneg %p39
        $region50: #{tpu_custom_call.1} parent=47 // pred_check_branch
          %304 = sbr.rel (%p302) target = $region52
        $region51: #{tpu_custom_call.1} parent=47 // pred_region
          %s305 = smul.u32 2, %s19
          %p306 = scmp.lt.s32.totalorder %s305, 3
          %s307 = scalar_select %p306, %s305, 3
          %s308 = smul.addr %s307, 4
          %s309 = scalar_lea.vmem %s0, %s308
          %s310 = smul.u32 2, %s19
        $region52: #{tpu_custom_call.1} parent=47 // pred_fallthru
          _
      $region48: #{tpu_custom_call.1} parent=5 // pred_fallthru
        _
      %p311 = scmp.le.s32.totalorder 1, %s19
      %p312 = scmp.lt.s32.totalorder %s19, 3
      %p313 = pnand %p311, %p312
      %p314 = pneg %p313
      // Predicated region
      $region53: #{tpu_custom_call.1} parent=5 // pred_check
        _
      $region54: #{tpu_custom_call.1} parent=5 // pred_check_branch
        %316 = sbr.rel (%p313) target = $region56
      $region55: #{tpu_custom_call.1} parent=5 // pred_region
        %s317 = ssub.s32 %s19, 1
        // Predicated region
        $region57: #{tpu_custom_call.1} parent=55 // pred_check
          %p318 = pneg %p66
        $region58: #{tpu_custom_call.1} parent=55 // pred_check_branch
          %320 = sbr.rel (%p318) target = $region60
        $region59: #{tpu_custom_call.1} parent=55 // pred_region
          %321 = dma.done [#allocation4], 4096
        $region60: #{tpu_custom_call.1} parent=55 // pred_fallthru
          _
        // Predicated region
        $region61: #{tpu_custom_call.1} parent=55 // pred_check
          %p322 = pneg %p108
        $region62: #{tpu_custom_call.1} parent=55 // pred_check_branch
          %324 = sbr.rel (%p322) target = $region64
        $region63: #{tpu_custom_call.1} parent=55 // pred_region
          %325 = dma.done [#allocation6], 8192
        $region64: #{tpu_custom_call.1} parent=55 // pred_fallthru
          _
        %s326 = smul.u32 2, %s24
        %p327 = scmp.lt.s32.totalorder %s326, 3
        %s328 = scalar_select %p327, %s326, 3
        %s329 = smul.addr %s328, 4
        %s330 = scalar_lea.vmem %s0, %s329
        %p331 = pneg %p45
        %p332 = pneg %p42
        %p333 = pneg %p66
        %p334 = pneg %p63
        %p335 = pneg %p87
        %p336 = pneg %p84
        %p337 = pneg %p108
        %p338 = pneg %p105
        %p339 = pneg %p129
        %p340 = pneg %p126
        %p341 = pneg %p150
        %p342 = pneg %p147
        %p343 = pneg %p171
        %p344 = pneg %p168
        %p345 = pneg %p192
        %p346 = pneg %p189
        %p347 = pneg %p213
        %p348 = pneg %p210
        %p349 = pneg %p239
        %p350 = pneg %p236
        %s351 = smul.u32 2, %s24
        %p352 = scmp.lt.s32.totalorder %s351, 3
        %s353 = scalar_select %p352, %s351, 3
        %s354 = smul.addr %s353, 8
        %s355 = scalar_lea.vmem %s9, %s354
        %s356 = smul.u32 2, %s24
        %p357 = scmp.lt.s32.totalorder %s356, 3
        %s358 = scalar_select %p357, %s356, 3
        %s359 = smul.addr %s358, 4
        %s360 = scalar_lea.vmem %s0, %s359
        %s361 = smul.u32 2, %s24
        %s362 = smul.u32 2, %s24
        %p363 = scmp.lt.s32.totalorder %s362, 3
        %s364 = scalar_select %p363, %s362, 3
        %s365 = smul.addr %s364, 8
        %s366 = scalar_lea.vmem %s9, %s365
        %s367 = smul.u32 2, %s24
        %v369 = vld [vmem:[%s360] sm:$0xf]
        %v370 = vld [vmem:[%s360 + $0x4] sm:$0xf]
        %v371 = vld [vmem:[#allocation3] sm:$0xff]
        %v372 = vld [vmem:[#allocation3 + $0x8] sm:$0xff]
        %v373 = vld [vmem:[#allocation3 + $0x10] sm:$0xff]
        %v374 = vld [vmem:[#allocation3 + $0x18] sm:$0xff]
        %v375 = vld [vmem:[#allocation3 + $0x20] sm:$0xff]
        %v376 = vld [vmem:[#allocation3 + $0x28] sm:$0xff]
        %v377 = vld [vmem:[#allocation3 + $0x30] sm:$0xff]
        %v378 = vld [vmem:[#allocation3 + $0x38] sm:$0xff]
        %v379 = vld [vmem:[#allocation3 + $0x40] sm:$0xff]
        %v380 = vld [vmem:[#allocation3 + $0x48] sm:$0xff]
        %v381 = vld [vmem:[#allocation3 + $0x50] sm:$0xff]
        %v382 = vld [vmem:[#allocation3 + $0x58] sm:$0xff]
        %v383 = vld [vmem:[#allocation3 + $0x60] sm:$0xff]
        %v384 = vld [vmem:[#allocation3 + $0x68] sm:$0xff]
        %v385 = vld [vmem:[#allocation3 + $0x70] sm:$0xff]
        %v386 = vld [vmem:[#allocation3 + $0x78] sm:$0xff]
        %v387 = vld [vmem:[#allocation3 + $0x80] sm:$0xff]
        %v388 = vld [vmem:[#allocation3 + $0x88] sm:$0xff]
        %v389 = vld [vmem:[#allocation3 + $0x90] sm:$0xff]
        %v390 = vld [vmem:[#allocation3 + $0x98] sm:$0xff]
        %v391 = vld [vmem:[#allocation3 + $0xa0] sm:$0xff]
        %v392 = vld [vmem:[#allocation3 + $0xa8] sm:$0xff]
        %v393 = vld [vmem:[#allocation3 + $0xb0] sm:$0xff]
        %v394 = vld [vmem:[#allocation3 + $0xb8] sm:$0xff]
        %v395 = vld [vmem:[#allocation3 + $0xc0] sm:$0xff]
        %v396 = vld [vmem:[#allocation3 + $0xc8] sm:$0xff]
        %v397 = vld [vmem:[#allocation3 + $0xd0] sm:$0xff]
        %v398 = vld [vmem:[#allocation3 + $0xd8] sm:$0xff]
        %v399 = vld [vmem:[#allocation3 + $0xe0] sm:$0xff]
        %v400 = vld [vmem:[#allocation3 + $0xe8] sm:$0xff]
        %v401 = vld [vmem:[#allocation3 + $0xf0] sm:$0xff]
        %v402 = vld [vmem:[#allocation3 + $0xf8] sm:$0xff]
        %v403 = vld [vmem:[%s2] sm:$0xff]
        %v405 = vlaneseq
        %v406 = vshrl.u32 %v405, 7
        %v407 = vsub.s32 0, %v406
        %v408 = vrot.slane %v403, %v407
        %v409 = vlaneseq
        %v410 = vshrl.u32 %v409, 7
        %v411 = vsub.s32 1, %v410
        %v412 = vrot.slane %v403, %v411
        %v413 = vlaneseq
        %v414 = vshrl.u32 %v413, 7
        %v415 = vsub.s32 2, %v414
        %v416 = vrot.slane %v403, %v415
        %v417 = vlaneseq
        %v418 = vshrl.u32 %v417, 7
        %v419 = vsub.s32 3, %v418
        %v420 = vrot.slane %v403, %v419
        %v421 = vlaneseq
        %v422 = vshrl.u32 %v421, 7
        %v423 = vsub.s32 4, %v422
        %v424 = vrot.slane %v403, %v423
        %v425 = vlaneseq
        %v426 = vshrl.u32 %v425, 7
        %v427 = vsub.s32 5, %v426
        %v428 = vrot.slane %v403, %v427
        %v429 = vlaneseq
        %v430 = vshrl.u32 %v429, 7
        %v431 = vsub.s32 6, %v430
        %v432 = vrot.slane %v403, %v431
        %v433 = vlaneseq
        %v434 = vshrl.u32 %v433, 7
        %v435 = vsub.s32 7, %v434
        %v436 = vrot.slane %v403, %v435
        %v447 = vunpack.c.l.b16 %v369
        %v448 = vunpack.c.l.b16 %v370
        %v449 = vpack.c.b16 %v448, %v447
        %v482 = vunpack.c.l.b16 %v371
        %v483 = vunpack.c.h.b16 %v371
        %v484 = vunpack.c.l.b16 %v372
        %v485 = vunpack.c.h.b16 %v372
        %v486 = vunpack.c.l.b16 %v373
        %v487 = vunpack.c.h.b16 %v373
        %v488 = vunpack.c.l.b16 %v374
        %v489 = vunpack.c.h.b16 %v374
        %v490 = vunpack.c.l.b16 %v375
        %v491 = vunpack.c.h.b16 %v375
        %v492 = vunpack.c.l.b16 %v376
        %v493 = vunpack.c.h.b16 %v376
        %v494 = vunpack.c.l.b16 %v377
        %v495 = vunpack.c.h.b16 %v377
        %v496 = vunpack.c.l.b16 %v378
        %v497 = vunpack.c.h.b16 %v378
        %v498 = vunpack.c.l.b16 %v379
        %v499 = vunpack.c.h.b16 %v379
        %v500 = vunpack.c.l.b16 %v380
        %v501 = vunpack.c.h.b16 %v380
        %v502 = vunpack.c.l.b16 %v381
        %v503 = vunpack.c.h.b16 %v381
        %v504 = vunpack.c.l.b16 %v382
        %v505 = vunpack.c.h.b16 %v382
        %v506 = vunpack.c.l.b16 %v383
        %v507 = vunpack.c.h.b16 %v383
        %v508 = vunpack.c.l.b16 %v384
        %v509 = vunpack.c.h.b16 %v384
        %v510 = vunpack.c.l.b16 %v385
        %v511 = vunpack.c.h.b16 %v385
        %v512 = vunpack.c.l.b16 %v386
        %v513 = vunpack.c.h.b16 %v386
        %v514 = vunpack.c.l.b16 %v387
        %v515 = vunpack.c.h.b16 %v387
        %v516 = vunpack.c.l.b16 %v388
        %v517 = vunpack.c.h.b16 %v388
        %v518 = vunpack.c.l.b16 %v389
        %v519 = vunpack.c.h.b16 %v389
        %v520 = vunpack.c.l.b16 %v390
        %v521 = vunpack.c.h.b16 %v390
        %v522 = vunpack.c.l.b16 %v391
        %v523 = vunpack.c.h.b16 %v391
        %v524 = vunpack.c.l.b16 %v392
        %v525 = vunpack.c.h.b16 %v392
        %v526 = vunpack.c.l.b16 %v393
        %v527 = vunpack.c.h.b16 %v393
        %v528 = vunpack.c.l.b16 %v394
        %v529 = vunpack.c.h.b16 %v394
        %v530 = vunpack.c.l.b16 %v395
        %v531 = vunpack.c.h.b16 %v395
        %v532 = vunpack.c.l.b16 %v396
        %v533 = vunpack.c.h.b16 %v396
        %v534 = vunpack.c.l.b16 %v397
        %v535 = vunpack.c.h.b16 %v397
        %v536 = vunpack.c.l.b16 %v398
        %v537 = vunpack.c.h.b16 %v398
        %v538 = vunpack.c.l.b16 %v399
        %v539 = vunpack.c.h.b16 %v399
        %v540 = vunpack.c.l.b16 %v400
        %v541 = vunpack.c.h.b16 %v400
        %v542 = vunpack.c.l.b16 %v401
        %v543 = vunpack.c.h.b16 %v401
        %v544 = vunpack.c.l.b16 %v402
        %v545 = vunpack.c.h.b16 %v402
        %v546 = vpack.c.b16 %v490, %v482
        %v547 = vpack.c.b16 %v491, %v483
        %v548 = vpack.c.b16 %v492, %v484
        %v549 = vpack.c.b16 %v493, %v485
        %v550 = vpack.c.b16 %v494, %v486
        %v551 = vpack.c.b16 %v495, %v487
        %v552 = vpack.c.b16 %v496, %v488
        %v553 = vpack.c.b16 %v497, %v489
        %v554 = vpack.c.b16 %v506, %v498
        %v555 = vpack.c.b16 %v507, %v499
        %v556 = vpack.c.b16 %v508, %v500
        %v557 = vpack.c.b16 %v509, %v501
        %v558 = vpack.c.b16 %v510, %v502
        %v559 = vpack.c.b16 %v511, %v503
        %v560 = vpack.c.b16 %v512, %v504
        %v561 = vpack.c.b16 %v513, %v505
        %v562 = vpack.c.b16 %v522, %v514
        %v563 = vpack.c.b16 %v523, %v515
        %v564 = vpack.c.b16 %v524, %v516
        %v565 = vpack.c.b16 %v525, %v517
        %v566 = vpack.c.b16 %v526, %v518
        %v567 = vpack.c.b16 %v527, %v519
        %v568 = vpack.c.b16 %v528, %v520
        %v569 = vpack.c.b16 %v529, %v521
        %v570 = vpack.c.b16 %v538, %v530
        %v571 = vpack.c.b16 %v539, %v531
        %v572 = vpack.c.b16 %v540, %v532
        %v573 = vpack.c.b16 %v541, %v533
        %v574 = vpack.c.b16 %v542, %v534
        %v575 = vpack.c.b16 %v543, %v535
        %v576 = vpack.c.b16 %v544, %v536
        %v577 = vpack.c.b16 %v545, %v537
        %vm610 = vcmask 523264
        %v612 = vsel %vm610, %v449, 0
        %614 = vmatprep.subr.bf16.mxu0 0
        %615 = vmatpush1.bf16.msra.mxu0 0
        %616 = vmatprep.subr.bf16.mxu0 0
        %617 = vmatpush1.bf16.msra.mxu0 0
        %618 = vmatprep.subr.bf16.mxu0 0
        %619 = vmatpush1.bf16.msra.mxu0 0
        %620 = vmatprep.subr.bf16.mxu0 0
        %621 = vmatpush1.bf16.msra.mxu0 0
        %622 = vmatprep.subr.bf16.mxu0 %v571
        %623 = vmatpush1.bf16.msra.mxu0 %v570
        %624 = vmatprep.subr.bf16.mxu0 %v563
        %625 = vmatpush1.bf16.msra.mxu0 %v562
        %626 = vmatprep.subr.bf16.mxu0 %v555
        %627 = vmatpush1.bf16.msra.mxu0 %v554
        %628 = vmatprep.subr.bf16.mxu0 %v547
        %629 = vmatpush1.bf16.msra.mxu0 %v546
        %630 = vmatprep.subr.bf16.mxu0 0
        %631 = vmatpush2.bf16.msra.mxu0 0
        %632 = vmatprep.subr.bf16.mxu0 0
        %633 = vmatpush2.bf16.msra.mxu0 0
        %634 = vmatprep.subr.bf16.mxu0 0
        %635 = vmatpush2.bf16.msra.mxu0 0
        %636 = vmatprep.subr.bf16.mxu0 0
        %637 = vmatpush2.bf16.msra.mxu0 0
        %638 = vmatprep.subr.bf16.mxu0 0
        %639 = vmatpush2.bf16.msra.mxu0 0
        %640 = vmatprep.subr.bf16.mxu0 0
        %641 = vmatpush2.bf16.msra.mxu0 0
        %642 = vmatprep.subr.bf16.mxu0 0
        %643 = vmatpush2.bf16.msra.mxu0 0
        %644 = vmatprep.subr.bf16.mxu0 0
        %645 = vmatpush2.bf16.msra.mxu0 0
        %646 = vmatprep.mubr.bf16.mxu0 0
        %647 = vmatmul.mubr.bf16.gmra.mxu0 %v612
        %v648 = vpop.f32.mrf.mxu0
        %v649 = vadd.f32 %v408, %v648
        %v650 = vpop.f32.mrf.mxu0
        %v651 = vadd.f32 %v412, %v650
        %v652 = vpop.f32.mrf.mxu0
        %v653 = vadd.f32 %v408, %v652
        %v654 = vpop.f32.mrf.mxu0
        %v655 = vadd.f32 %v412, %v654
        %656 = vdwg.mxu0
        %657 = vmatprep.subr.bf16.mxu0 0
        %658 = vmatpush1.bf16.msra.mxu0 0
        %659 = vmatprep.subr.bf16.mxu0 0
        %660 = vmatpush1.bf16.msra.mxu0 0
        %661 = vmatprep.subr.bf16.mxu0 0
        %662 = vmatpush1.bf16.msra.mxu0 0
        %663 = vmatprep.subr.bf16.mxu0 0
        %664 = vmatpush1.bf16.msra.mxu0 0
        %665 = vmatprep.subr.bf16.mxu0 %v573
        %666 = vmatpush1.bf16.msra.mxu0 %v572
        %667 = vmatprep.subr.bf16.mxu0 %v565
        %668 = vmatpush1.bf16.msra.mxu0 %v564
        %669 = vmatprep.subr.bf16.mxu0 %v557
        %670 = vmatpush1.bf16.msra.mxu0 %v556
        %671 = vmatprep.subr.bf16.mxu0 %v549
        %672 = vmatpush1.bf16.msra.mxu0 %v548
        %673 = vmatprep.subr.bf16.mxu0 0
        %674 = vmatpush2.bf16.msra.mxu0 0
        %675 = vmatprep.subr.bf16.mxu0 0
        %676 = vmatpush2.bf16.msra.mxu0 0
        %677 = vmatprep.subr.bf16.mxu0 0
        %678 = vmatpush2.bf16.msra.mxu0 0
        %679 = vmatprep.subr.bf16.mxu0 0
        %680 = vmatpush2.bf16.msra.mxu0 0
        %681 = vmatprep.subr.bf16.mxu0 0
        %682 = vmatpush2.bf16.msra.mxu0 0
        %683 = vmatprep.subr.bf16.mxu0 0
        %684 = vmatpush2.bf16.msra.mxu0 0
        %685 = vmatprep.subr.bf16.mxu0 0
        %686 = vmatpush2.bf16.msra.mxu0 0
        %687 = vmatprep.subr.bf16.mxu0 0
        %688 = vmatpush2.bf16.msra.mxu0 0
        %689 = vmatprep.mubr.bf16.mxu0 0
        %690 = vmatmul.mubr.bf16.gmra.mxu0 %v612
        %v691 = vpop.f32.mrf.mxu0
        %v692 = vadd.f32 %v416, %v691
        %v693 = vpop.f32.mrf.mxu0
        %v694 = vadd.f32 %v420, %v693
        %v695 = vpop.f32.mrf.mxu0
        %v696 = vadd.f32 %v416, %v695
        %v697 = vpop.f32.mrf.mxu0
        %v698 = vadd.f32 %v420, %v697
        %699 = vdwg.mxu0
        %700 = vmatprep.subr.bf16.mxu0 0
        %701 = vmatpush1.bf16.msra.mxu0 0
        %702 = vmatprep.subr.bf16.mxu0 0
        %703 = vmatpush1.bf16.msra.mxu0 0
        %704 = vmatprep.subr.bf16.mxu0 0
        %705 = vmatpush1.bf16.msra.mxu0 0
        %706 = vmatprep.subr.bf16.mxu0 0
        %707 = vmatpush1.bf16.msra.mxu0 0
        %708 = vmatprep.subr.bf16.mxu0 %v575
        %709 = vmatpush1.bf16.msra.mxu0 %v574
        %710 = vmatprep.subr.bf16.mxu0 %v567
        %711 = vmatpush1.bf16.msra.mxu0 %v566
        %712 = vmatprep.subr.bf16.mxu0 %v559
        %713 = vmatpush1.bf16.msra.mxu0 %v558
        %714 = vmatprep.subr.bf16.mxu0 %v551
        %715 = vmatpush1.bf16.msra.mxu0 %v550
        %716 = vmatprep.subr.bf16.mxu0 0
        %717 = vmatpush2.bf16.msra.mxu0 0
        %718 = vmatprep.subr.bf16.mxu0 0
        %719 = vmatpush2.bf16.msra.mxu0 0
        %720 = vmatprep.subr.bf16.mxu0 0
        %721 = vmatpush2.bf16.msra.mxu0 0
        %722 = vmatprep.subr.bf16.mxu0 0
        %723 = vmatpush2.bf16.msra.mxu0 0
        %724 = vmatprep.subr.bf16.mxu0 0
        %725 = vmatpush2.bf16.msra.mxu0 0
        %726 = vmatprep.subr.bf16.mxu0 0
        %727 = vmatpush2.bf16.msra.mxu0 0
        %728 = vmatprep.subr.bf16.mxu0 0
        %729 = vmatpush2.bf16.msra.mxu0 0
        %730 = vmatprep.subr.bf16.mxu0 0
        %731 = vmatpush2.bf16.msra.mxu0 0
        %732 = vmatprep.mubr.bf16.mxu0 0
        %733 = vmatmul.mubr.bf16.gmra.mxu0 %v612
        %v734 = vpop.f32.mrf.mxu0
        %v735 = vadd.f32 %v424, %v734
        %v736 = vpop.f32.mrf.mxu0
        %v737 = vadd.f32 %v428, %v736
        %v738 = vpop.f32.mrf.mxu0
        %v739 = vadd.f32 %v424, %v738
        %v740 = vpop.f32.mrf.mxu0
        %v741 = vadd.f32 %v428, %v740
        %742 = vdwg.mxu0
        %743 = vmatprep.subr.bf16.mxu0 0
        %744 = vmatpush1.bf16.msra.mxu0 0
        %745 = vmatprep.subr.bf16.mxu0 0
        %746 = vmatpush1.bf16.msra.mxu0 0
        %747 = vmatprep.subr.bf16.mxu0 0
        %748 = vmatpush1.bf16.msra.mxu0 0
        %749 = vmatprep.subr.bf16.mxu0 0
        %750 = vmatpush1.bf16.msra.mxu0 0
        %751 = vmatprep.subr.bf16.mxu0 %v577
        %752 = vmatpush1.bf16.msra.mxu0 %v576
        %753 = vmatprep.subr.bf16.mxu0 %v569
        %754 = vmatpush1.bf16.msra.mxu0 %v568
        %755 = vmatprep.subr.bf16.mxu0 %v561
        %756 = vmatpush1.bf16.msra.mxu0 %v560
        %757 = vmatprep.subr.bf16.mxu0 %v553
        %758 = vmatpush1.bf16.msra.mxu0 %v552
        %759 = vmatprep.subr.bf16.mxu0 0
        %760 = vmatpush2.bf16.msra.mxu0 0
        %761 = vmatprep.subr.bf16.mxu0 0
        %762 = vmatpush2.bf16.msra.mxu0 0
        %763 = vmatprep.subr.bf16.mxu0 0
        %764 = vmatpush2.bf16.msra.mxu0 0
        %765 = vmatprep.subr.bf16.mxu0 0
        %766 = vmatpush2.bf16.msra.mxu0 0
        %767 = vmatprep.subr.bf16.mxu0 0
        %768 = vmatpush2.bf16.msra.mxu0 0
        %769 = vmatprep.subr.bf16.mxu0 0
        %770 = vmatpush2.bf16.msra.mxu0 0
        %771 = vmatprep.subr.bf16.mxu0 0
        %772 = vmatpush2.bf16.msra.mxu0 0
        %773 = vmatprep.subr.bf16.mxu0 0
        %774 = vmatpush2.bf16.msra.mxu0 0
        %775 = vmatprep.mubr.bf16.mxu0 0
        %776 = vmatmul.mubr.bf16.gmra.mxu0 %v612
        %v777 = vpop.f32.mrf.mxu0
        %v778 = vadd.f32 %v432, %v777
        %v779 = vpop.f32.mrf.mxu0
        %v780 = vadd.f32 %v436, %v779
        %v781 = vpop.f32.mrf.mxu0
        %v782 = vadd.f32 %v432, %v781
        %v783 = vpop.f32.mrf.mxu0
        %v784 = vadd.f32 %v436, %v783
        %785 = vdwg.mxu0
        %vm786 = vcmp.gt.f32.partialorder %v649, 0.0
        %vm787 = vcmp.gt.f32.partialorder %v651, 0.0
        %vm788 = vcmp.gt.f32.partialorder %v692, 0.0
        %vm789 = vcmp.gt.f32.partialorder %v694, 0.0
        %vm790 = vcmp.gt.f32.partialorder %v735, 0.0
        %vm791 = vcmp.gt.f32.partialorder %v737, 0.0
        %vm792 = vcmp.gt.f32.partialorder %v778, 0.0
        %vm793 = vcmp.gt.f32.partialorder %v780, 0.0
        %vm794 = vcmp.gt.f32.partialorder %v653, 0.0
        %vm795 = vcmp.gt.f32.partialorder %v655, 0.0
        %vm796 = vcmp.gt.f32.partialorder %v696, 0.0
        %vm797 = vcmp.gt.f32.partialorder %v698, 0.0
        %vm798 = vcmp.gt.f32.partialorder %v739, 0.0
        %vm799 = vcmp.gt.f32.partialorder %v741, 0.0
        %vm800 = vcmp.gt.f32.partialorder %v782, 0.0
        %vm801 = vcmp.gt.f32.partialorder %v784, 0.0
        %v802 = vmul.f32 %v649, 0.01
        %v803 = vmul.f32 %v651, 0.01
        %v804 = vmul.f32 %v692, 0.01
        %v805 = vmul.f32 %v694, 0.01
        %v806 = vmul.f32 %v735, 0.01
        %v807 = vmul.f32 %v737, 0.01
        %v808 = vmul.f32 %v778, 0.01
        %v809 = vmul.f32 %v780, 0.01
        %v810 = vmul.f32 %v653, 0.01
        %v811 = vmul.f32 %v655, 0.01
        %v812 = vmul.f32 %v696, 0.01
        %v813 = vmul.f32 %v698, 0.01
        %v814 = vmul.f32 %v739, 0.01
        %v815 = vmul.f32 %v741, 0.01
        %v816 = vmul.f32 %v782, 0.01
        %v817 = vmul.f32 %v784, 0.01
        %v818 = vsel %vm786, %v649, %v802
        %v819 = vsel %vm787, %v651, %v803
        %v820 = vsel %vm788, %v692, %v804
        %v821 = vsel %vm789, %v694, %v805
        %v822 = vsel %vm790, %v735, %v806
        %v823 = vsel %vm791, %v737, %v807
        %v824 = vsel %vm792, %v778, %v808
        %v825 = vsel %vm793, %v780, %v809
        %v826 = vsel %vm794, %v653, %v810
        %v827 = vsel %vm795, %v655, %v811
        %v828 = vsel %vm796, %v696, %v812
        %v829 = vsel %vm797, %v698, %v813
        %v830 = vsel %vm798, %v739, %v814
        %v831 = vsel %vm799, %v741, %v815
        %v832 = vsel %vm800, %v782, %v816
        %v833 = vsel %vm801, %v784, %v817
        %v834 = vpack.c.bf16 %v826, %v818
        %v835 = vpack.c.bf16 %v827, %v819
        %v836 = vpack.c.bf16 %v828, %v820
        %v837 = vpack.c.bf16 %v829, %v821
        %v838 = vpack.c.bf16 %v830, %v822
        %v839 = vpack.c.bf16 %v831, %v823
        %v840 = vpack.c.bf16 %v832, %v824
        %v841 = vpack.c.bf16 %v833, %v825
        %v842 = vld [vmem:[#allocation5] sm:$0xf]
        %v843 = vld [vmem:[#allocation5 + $0x4] sm:$0xf]
        %v844 = vld [vmem:[#allocation5 + $0x8] sm:$0xf]
        %v845 = vld [vmem:[#allocation5 + $0xc] sm:$0xf]
        %v846 = vld [vmem:[#allocation5 + $0x10] sm:$0xf]
        %v847 = vld [vmem:[#allocation5 + $0x14] sm:$0xf]
        %v848 = vld [vmem:[#allocation5 + $0x18] sm:$0xf]
        %v849 = vld [vmem:[#allocation5 + $0x1c] sm:$0xf]
        %v850 = vld [vmem:[#allocation5 + $0x20] sm:$0xf]
        %v851 = vld [vmem:[#allocation5 + $0x24] sm:$0xf]
        %v852 = vld [vmem:[#allocation5 + $0x28] sm:$0xf]
        %v853 = vld [vmem:[#allocation5 + $0x2c] sm:$0xf]
        %v854 = vld [vmem:[#allocation5 + $0x30] sm:$0xf]
        %v855 = vld [vmem:[#allocation5 + $0x34] sm:$0xf]
        %v856 = vld [vmem:[#allocation5 + $0x38] sm:$0xf]
        %v857 = vld [vmem:[#allocation5 + $0x3c] sm:$0xf]
        %v858 = vld [vmem:[#allocation5 + $0x40] sm:$0xf]
        %v859 = vld [vmem:[#allocation5 + $0x44] sm:$0xf]
        %v860 = vld [vmem:[#allocation5 + $0x48] sm:$0xf]
        %v861 = vld [vmem:[#allocation5 + $0x4c] sm:$0xf]
        %v862 = vld [vmem:[#allocation5 + $0x50] sm:$0xf]
        %v863 = vld [vmem:[#allocation5 + $0x54] sm:$0xf]
        %v864 = vld [vmem:[#allocation5 + $0x58] sm:$0xf]
        %v865 = vld [vmem:[#allocation5 + $0x5c] sm:$0xf]
        %v866 = vld [vmem:[#allocation5 + $0x60] sm:$0xf]
        %v867 = vld [vmem:[#allocation5 + $0x64] sm:$0xf]
        %v868 = vld [vmem:[#allocation5 + $0x68] sm:$0xf]
        %v869 = vld [vmem:[#allocation5 + $0x6c] sm:$0xf]
        %v870 = vld [vmem:[#allocation5 + $0x70] sm:$0xf]
        %v871 = vld [vmem:[#allocation5 + $0x74] sm:$0xf]
        %v872 = vld [vmem:[#allocation5 + $0x78] sm:$0xf]
        %v873 = vld [vmem:[#allocation5 + $0x7c] sm:$0xf]
        %v874 = vld [vmem:[#allocation5 + $0x80] sm:$0xf]
        %v875 = vld [vmem:[#allocation5 + $0x84] sm:$0xf]
        %v876 = vld [vmem:[#allocation5 + $0x88] sm:$0xf]
        %v877 = vld [vmem:[#allocation5 + $0x8c] sm:$0xf]
        %v878 = vld [vmem:[#allocation5 + $0x90] sm:$0xf]
        %v879 = vld [vmem:[#allocation5 + $0x94] sm:$0xf]
        %v880 = vld [vmem:[#allocation5 + $0x98] sm:$0xf]
        %v881 = vld [vmem:[#allocation5 + $0x9c] sm:$0xf]
        %v882 = vld [vmem:[#allocation5 + $0xa0] sm:$0xf]
        %v883 = vld [vmem:[#allocation5 + $0xa4] sm:$0xf]
        %v884 = vld [vmem:[#allocation5 + $0xa8] sm:$0xf]
        %v885 = vld [vmem:[#allocation5 + $0xac] sm:$0xf]
        %v886 = vld [vmem:[#allocation5 + $0xb0] sm:$0xf]
        %v887 = vld [vmem:[#allocation5 + $0xb4] sm:$0xf]
        %v888 = vld [vmem:[#allocation5 + $0xb8] sm:$0xf]
        %v889 = vld [vmem:[#allocation5 + $0xbc] sm:$0xf]
        %v890 = vld [vmem:[#allocation5 + $0xc0] sm:$0xf]
        %v891 = vld [vmem:[#allocation5 + $0xc4] sm:$0xf]
        %v892 = vld [vmem:[#allocation5 + $0xc8] sm:$0xf]
        %v893 = vld [vmem:[#allocation5 + $0xcc] sm:$0xf]
        %v894 = vld [vmem:[#allocation5 + $0xd0] sm:$0xf]
        %v895 = vld [vmem:[#allocation5 + $0xd4] sm:$0xf]
        %v896 = vld [vmem:[#allocation5 + $0xd8] sm:$0xf]
        %v897 = vld [vmem:[#allocation5 + $0xdc] sm:$0xf]
        %v898 = vld [vmem:[#allocation5 + $0xe0] sm:$0xf]
        %v899 = vld [vmem:[#allocation5 + $0xe4] sm:$0xf]
        %v900 = vld [vmem:[#allocation5 + $0xe8] sm:$0xf]
        %v901 = vld [vmem:[#allocation5 + $0xec] sm:$0xf]
        %v902 = vld [vmem:[#allocation5 + $0xf0] sm:$0xf]
        %v903 = vld [vmem:[#allocation5 + $0xf4] sm:$0xf]
        %v904 = vld [vmem:[#allocation5 + $0xf8] sm:$0xf]
        %v905 = vld [vmem:[#allocation5 + $0xfc] sm:$0xf]
        %v906 = vld [vmem:[#allocation5 + $0x100] sm:$0xf]
        %v907 = vld [vmem:[#allocation5 + $0x104] sm:$0xf]
        %v908 = vld [vmem:[#allocation5 + $0x108] sm:$0xf]
        %v909 = vld [vmem:[#allocation5 + $0x10c] sm:$0xf]
        %v910 = vld [vmem:[#allocation5 + $0x110] sm:$0xf]
        %v911 = vld [vmem:[#allocation5 + $0x114] sm:$0xf]
        %v912 = vld [vmem:[#allocation5 + $0x118] sm:$0xf]
        %v913 = vld [vmem:[#allocation5 + $0x11c] sm:$0xf]
        %v914 = vld [vmem:[#allocation5 + $0x120] sm:$0xf]
        %v915 = vld [vmem:[#allocation5 + $0x124] sm:$0xf]
        %v916 = vld [vmem:[#allocation5 + $0x128] sm:$0xf]
        %v917 = vld [vmem:[#allocation5 + $0x12c] sm:$0xf]
        %v918 = vld [vmem:[#allocation5 + $0x130] sm:$0xf]
        %v919 = vld [vmem:[#allocation5 + $0x134] sm:$0xf]
        %v920 = vld [vmem:[#allocation5 + $0x138] sm:$0xf]
        %v921 = vld [vmem:[#allocation5 + $0x13c] sm:$0xf]
        %v922 = vld [vmem:[#allocation5 + $0x140] sm:$0xf]
        %v923 = vld [vmem:[#allocation5 + $0x144] sm:$0xf]
        %v924 = vld [vmem:[#allocation5 + $0x148] sm:$0xf]
        %v925 = vld [vmem:[#allocation5 + $0x14c] sm:$0xf]
        %v926 = vld [vmem:[#allocation5 + $0x150] sm:$0xf]
        %v927 = vld [vmem:[#allocation5 + $0x154] sm:$0xf]
        %v928 = vld [vmem:[#allocation5 + $0x158] sm:$0xf]
        %v929 = vld [vmem:[#allocation5 + $0x15c] sm:$0xf]
        %v930 = vld [vmem:[#allocation5 + $0x160] sm:$0xf]
        %v931 = vld [vmem:[#allocation5 + $0x164] sm:$0xf]
        %v932 = vld [vmem:[#allocation5 + $0x168] sm:$0xf]
        %v933 = vld [vmem:[#allocation5 + $0x16c] sm:$0xf]
        %v934 = vld [vmem:[#allocation5 + $0x170] sm:$0xf]
        %v935 = vld [vmem:[#allocation5 + $0x174] sm:$0xf]
        %v936 = vld [vmem:[#allocation5 + $0x178] sm:$0xf]
        %v937 = vld [vmem:[#allocation5 + $0x17c] sm:$0xf]
        %v938 = vld [vmem:[#allocation5 + $0x180] sm:$0xf]
        %v939 = vld [vmem:[#allocation5 + $0x184] sm:$0xf]
        %v940 = vld [vmem:[#allocation5 + $0x188] sm:$0xf]
        %v941 = vld [vmem:[#allocation5 + $0x18c] sm:$0xf]
        %v942 = vld [vmem:[#allocation5 + $0x190] sm:$0xf]
        %v943 = vld [vmem:[#allocation5 + $0x194] sm:$0xf]
        %v944 = vld [vmem:[#allocation5 + $0x198] sm:$0xf]
        %v945 = vld [vmem:[#allocation5 + $0x19c] sm:$0xf]
        %v946 = vld [vmem:[#allocation5 + $0x1a0] sm:$0xf]
        %v947 = vld [vmem:[#allocation5 + $0x1a4] sm:$0xf]
        %v948 = vld [vmem:[#allocation5 + $0x1a8] sm:$0xf]
        %v949 = vld [vmem:[#allocation5 + $0x1ac] sm:$0xf]
        %v950 = vld [vmem:[#allocation5 + $0x1b0] sm:$0xf]
        %v951 = vld [vmem:[#allocation5 + $0x1b4] sm:$0xf]
        %v952 = vld [vmem:[#allocation5 + $0x1b8] sm:$0xf]
        %v953 = vld [vmem:[#allocation5 + $0x1bc] sm:$0xf]
        %v954 = vld [vmem:[#allocation5 + $0x1c0] sm:$0xf]
        %v955 = vld [vmem:[#allocation5 + $0x1c4] sm:$0xf]
        %v956 = vld [vmem:[#allocation5 + $0x1c8] sm:$0xf]
        %v957 = vld [vmem:[#allocation5 + $0x1cc] sm:$0xf]
        %v958 = vld [vmem:[#allocation5 + $0x1d0] sm:$0xf]
        %v959 = vld [vmem:[#allocation5 + $0x1d4] sm:$0xf]
        %v960 = vld [vmem:[#allocation5 + $0x1d8] sm:$0xf]
        %v961 = vld [vmem:[#allocation5 + $0x1dc] sm:$0xf]
        %v962 = vld [vmem:[#allocation5 + $0x1e0] sm:$0xf]
        %v963 = vld [vmem:[#allocation5 + $0x1e4] sm:$0xf]
        %v964 = vld [vmem:[#allocation5 + $0x1e8] sm:$0xf]
        %v965 = vld [vmem:[#allocation5 + $0x1ec] sm:$0xf]
        %v966 = vld [vmem:[#allocation5 + $0x1f0] sm:$0xf]
        %v967 = vld [vmem:[#allocation5 + $0x1f4] sm:$0xf]
        %v968 = vld [vmem:[#allocation5 + $0x1f8] sm:$0xf]
        %v969 = vld [vmem:[#allocation5 + $0x1fc] sm:$0xf]
        %v970 = vld [vmem:[%s4] sm:$0x1]
        %v972 = vlaneseq
        %v973 = vshrl.u32 %v972, 7
        %v974 = vsub.s32 0, %v973
        %v975 = vrot.slane %v970, %v974
        %v1105 = vunpack.c.l.b16 %v842
        %v1106 = vunpack.c.l.b16 %v843
        %v1107 = vunpack.c.l.b16 %v844
        %v1108 = vunpack.c.l.b16 %v845
        %v1109 = vunpack.c.l.b16 %v846
        %v1110 = vunpack.c.l.b16 %v847
        %v1111 = vunpack.c.l.b16 %v848
        %v1112 = vunpack.c.l.b16 %v849
        %v1113 = vunpack.c.l.b16 %v850
        %v1114 = vunpack.c.l.b16 %v851
        %v1115 = vunpack.c.l.b16 %v852
        %v1116 = vunpack.c.l.b16 %v853
        %v1117 = vunpack.c.l.b16 %v854
        %v1118 = vunpack.c.l.b16 %v855
        %v1119 = vunpack.c.l.b16 %v856
        %v1120 = vunpack.c.l.b16 %v857
        %v1121 = vunpack.c.l.b16 %v858
        %v1122 = vunpack.c.l.b16 %v859
        %v1123 = vunpack.c.l.b16 %v860
        %v1124 = vunpack.c.l.b16 %v861
        %v1125 = vunpack.c.l.b16 %v862
        %v1126 = vunpack.c.l.b16 %v863
        %v1127 = vunpack.c.l.b16 %v864
        %v1128 = vunpack.c.l.b16 %v865
        %v1129 = vunpack.c.l.b16 %v866
        %v1130 = vunpack.c.l.b16 %v867
        %v1131 = vunpack.c.l.b16 %v868
        %v1132 = vunpack.c.l.b16 %v869
        %v1133 = vunpack.c.l.b16 %v870
        %v1134 = vunpack.c.l.b16 %v871
        %v1135 = vunpack.c.l.b16 %v872
        %v1136 = vunpack.c.l.b16 %v873
        %v1137 = vunpack.c.l.b16 %v874
        %v1138 = vunpack.c.l.b16 %v875
        %v1139 = vunpack.c.l.b16 %v876
        %v1140 = vunpack.c.l.b16 %v877
        %v1141 = vunpack.c.l.b16 %v878
        %v1142 = vunpack.c.l.b16 %v879
        %v1143 = vunpack.c.l.b16 %v880
        %v1144 = vunpack.c.l.b16 %v881
        %v1145 = vunpack.c.l.b16 %v882
        %v1146 = vunpack.c.l.b16 %v883
        %v1147 = vunpack.c.l.b16 %v884
        %v1148 = vunpack.c.l.b16 %v885
        %v1149 = vunpack.c.l.b16 %v886
        %v1150 = vunpack.c.l.b16 %v887
        %v1151 = vunpack.c.l.b16 %v888
        %v1152 = vunpack.c.l.b16 %v889
        %v1153 = vunpack.c.l.b16 %v890
        %v1154 = vunpack.c.l.b16 %v891
        %v1155 = vunpack.c.l.b16 %v892
        %v1156 = vunpack.c.l.b16 %v893
        %v1157 = vunpack.c.l.b16 %v894
        %v1158 = vunpack.c.l.b16 %v895
        %v1159 = vunpack.c.l.b16 %v896
        %v1160 = vunpack.c.l.b16 %v897
        %v1161 = vunpack.c.l.b16 %v898
        %v1162 = vunpack.c.l.b16 %v899
        %v1163 = vunpack.c.l.b16 %v900
        %v1164 = vunpack.c.l.b16 %v901
        %v1165 = vunpack.c.l.b16 %v902
        %v1166 = vunpack.c.l.b16 %v903
        %v1167 = vunpack.c.l.b16 %v904
        %v1168 = vunpack.c.l.b16 %v905
        %v1169 = vunpack.c.l.b16 %v906
        %v1170 = vunpack.c.l.b16 %v907
        %v1171 = vunpack.c.l.b16 %v908
        %v1172 = vunpack.c.l.b16 %v909
        %v1173 = vunpack.c.l.b16 %v910
        %v1174 = vunpack.c.l.b16 %v911
        %v1175 = vunpack.c.l.b16 %v912
        %v1176 = vunpack.c.l.b16 %v913
        %v1177 = vunpack.c.l.b16 %v914
        %v1178 = vunpack.c.l.b16 %v915
        %v1179 = vunpack.c.l.b16 %v916
        %v1180 = vunpack.c.l.b16 %v917
        %v1181 = vunpack.c.l.b16 %v918
        %v1182 = vunpack.c.l.b16 %v919
        %v1183 = vunpack.c.l.b16 %v920
        %v1184 = vunpack.c.l.b16 %v921
        %v1185 = vunpack.c.l.b16 %v922
        %v1186 = vunpack.c.l.b16 %v923
        %v1187 = vunpack.c.l.b16 %v924
        %v1188 = vunpack.c.l.b16 %v925
        %v1189 = vunpack.c.l.b16 %v926
        %v1190 = vunpack.c.l.b16 %v927
        %v1191 = vunpack.c.l.b16 %v928
        %v1192 = vunpack.c.l.b16 %v929
        %v1193 = vunpack.c.l.b16 %v930
        %v1194 = vunpack.c.l.b16 %v931
        %v1195 = vunpack.c.l.b16 %v932
        %v1196 = vunpack.c.l.b16 %v933
        %v1197 = vunpack.c.l.b16 %v934
        %v1198 = vunpack.c.l.b16 %v935
        %v1199 = vunpack.c.l.b16 %v936
        %v1200 = vunpack.c.l.b16 %v937
        %v1201 = vunpack.c.l.b16 %v938
        %v1202 = vunpack.c.l.b16 %v939
        %v1203 = vunpack.c.l.b16 %v940
        %v1204 = vunpack.c.l.b16 %v941
        %v1205 = vunpack.c.l.b16 %v942
        %v1206 = vunpack.c.l.b16 %v943
        %v1207 = vunpack.c.l.b16 %v944
        %v1208 = vunpack.c.l.b16 %v945
        %v1209 = vunpack.c.l.b16 %v946
        %v1210 = vunpack.c.l.b16 %v947
        %v1211 = vunpack.c.l.b16 %v948
        %v1212 = vunpack.c.l.b16 %v949
        %v1213 = vunpack.c.l.b16 %v950
        %v1214 = vunpack.c.l.b16 %v951
        %v1215 = vunpack.c.l.b16 %v952
        %v1216 = vunpack.c.l.b16 %v953
        %v1217 = vunpack.c.l.b16 %v954
        %v1218 = vunpack.c.l.b16 %v955
        %v1219 = vunpack.c.l.b16 %v956
        %v1220 = vunpack.c.l.b16 %v957
        %v1221 = vunpack.c.l.b16 %v958
        %v1222 = vunpack.c.l.b16 %v959
        %v1223 = vunpack.c.l.b16 %v960
        %v1224 = vunpack.c.l.b16 %v961
        %v1225 = vunpack.c.l.b16 %v962
        %v1226 = vunpack.c.l.b16 %v963
        %v1227 = vunpack.c.l.b16 %v964
        %v1228 = vunpack.c.l.b16 %v965
        %v1229 = vunpack.c.l.b16 %v966
        %v1230 = vunpack.c.l.b16 %v967
        %v1231 = vunpack.c.l.b16 %v968
        %v1232 = vunpack.c.l.b16 %v969
        %v1233 = vpack.c.b16 %v1106, %v1105
        %v1234 = vpack.c.b16 %v1108, %v1107
        %v1235 = vpack.c.b16 %v1110, %v1109
        %v1236 = vpack.c.b16 %v1112, %v1111
        %v1237 = vpack.c.b16 %v1114, %v1113
        %v1238 = vpack.c.b16 %v1116, %v1115
        %v1239 = vpack.c.b16 %v1118, %v1117
        %v1240 = vpack.c.b16 %v1120, %v1119
        %v1241 = vpack.c.b16 %v1122, %v1121
        %v1242 = vpack.c.b16 %v1124, %v1123
        %v1243 = vpack.c.b16 %v1126, %v1125
        %v1244 = vpack.c.b16 %v1128, %v1127
        %v1245 = vpack.c.b16 %v1130, %v1129
        %v1246 = vpack.c.b16 %v1132, %v1131
        %v1247 = vpack.c.b16 %v1134, %v1133
        %v1248 = vpack.c.b16 %v1136, %v1135
        %v1249 = vpack.c.b16 %v1138, %v1137
        %v1250 = vpack.c.b16 %v1140, %v1139
        %v1251 = vpack.c.b16 %v1142, %v1141
        %v1252 = vpack.c.b16 %v1144, %v1143
        %v1253 = vpack.c.b16 %v1146, %v1145
        %v1254 = vpack.c.b16 %v1148, %v1147
        %v1255 = vpack.c.b16 %v1150, %v1149
        %v1256 = vpack.c.b16 %v1152, %v1151
        %v1257 = vpack.c.b16 %v1154, %v1153
        %v1258 = vpack.c.b16 %v1156, %v1155
        %v1259 = vpack.c.b16 %v1158, %v1157
        %v1260 = vpack.c.b16 %v1160, %v1159
        %v1261 = vpack.c.b16 %v1162, %v1161
        %v1262 = vpack.c.b16 %v1164, %v1163
        %v1263 = vpack.c.b16 %v1166, %v1165
        %v1264 = vpack.c.b16 %v1168, %v1167
        %v1265 = vpack.c.b16 %v1170, %v1169
        %v1266 = vpack.c.b16 %v1172, %v1171
        %v1267 = vpack.c.b16 %v1174, %v1173
        %v1268 = vpack.c.b16 %v1176, %v1175
        %v1269 = vpack.c.b16 %v1178, %v1177
        %v1270 = vpack.c.b16 %v1180, %v1179
        %v1271 = vpack.c.b16 %v1182, %v1181
        %v1272 = vpack.c.b16 %v1184, %v1183
        %v1273 = vpack.c.b16 %v1186, %v1185
        %v1274 = vpack.c.b16 %v1188, %v1187
        %v1275 = vpack.c.b16 %v1190, %v1189
        %v1276 = vpack.c.b16 %v1192, %v1191
        %v1277 = vpack.c.b16 %v1194, %v1193
        %v1278 = vpack.c.b16 %v1196, %v1195
        %v1279 = vpack.c.b16 %v1198, %v1197
        %v1280 = vpack.c.b16 %v1200, %v1199
        %v1281 = vpack.c.b16 %v1202, %v1201
        %v1282 = vpack.c.b16 %v1204, %v1203
        %v1283 = vpack.c.b16 %v1206, %v1205
        %v1284 = vpack.c.b16 %v1208, %v1207
        %v1285 = vpack.c.b16 %v1210, %v1209
        %v1286 = vpack.c.b16 %v1212, %v1211
        %v1287 = vpack.c.b16 %v1214, %v1213
        %v1288 = vpack.c.b16 %v1216, %v1215
        %v1289 = vpack.c.b16 %v1218, %v1217
        %v1290 = vpack.c.b16 %v1220, %v1219
        %v1291 = vpack.c.b16 %v1222, %v1221
        %v1292 = vpack.c.b16 %v1224, %v1223
        %v1293 = vpack.c.b16 %v1226, %v1225
        %v1294 = vpack.c.b16 %v1228, %v1227
        %v1295 = vpack.c.b16 %v1230, %v1229
        %v1296 = vpack.c.b16 %v1232, %v1231
        %1361 = vmatprep.subr.bf16.mxu0 0
        %1362 = vmatpush1.bf16.msra.mxu0 %v1240
        %1363 = vmatprep.subr.bf16.mxu0 0
        %1364 = vmatpush1.bf16.msra.mxu0 %v1239
        %1365 = vmatprep.subr.bf16.mxu0 0
        %1366 = vmatpush1.bf16.msra.mxu0 %v1238
        %1367 = vmatprep.subr.bf16.mxu0 0
        %1368 = vmatpush1.bf16.msra.mxu0 %v1237
        %1369 = vmatprep.subr.bf16.mxu0 0
        %1370 = vmatpush1.bf16.msra.mxu0 %v1236
        %1371 = vmatprep.subr.bf16.mxu0 0
        %1372 = vmatpush1.bf16.msra.mxu0 %v1235
        %1373 = vmatprep.subr.bf16.mxu0 0
        %1374 = vmatpush1.bf16.msra.mxu0 %v1234
        %1375 = vmatprep.subr.bf16.mxu0 0
        %1376 = vmatpush1.bf16.msra.mxu0 %v1233
        %1377 = vmatprep.subr.bf16.mxu0 0
        %1378 = vmatpush2.bf16.msra.mxu0 %v1248
        %1379 = vmatprep.subr.bf16.mxu0 0
        %1380 = vmatpush2.bf16.msra.mxu0 %v1247
        %1381 = vmatprep.subr.bf16.mxu0 0
        %1382 = vmatpush2.bf16.msra.mxu0 %v1246
        %1383 = vmatprep.subr.bf16.mxu0 0
        %1384 = vmatpush2.bf16.msra.mxu0 %v1245
        %1385 = vmatprep.subr.bf16.mxu0 0
        %1386 = vmatpush2.bf16.msra.mxu0 %v1244
        %1387 = vmatprep.subr.bf16.mxu0 0
        %1388 = vmatpush2.bf16.msra.mxu0 %v1243
        %1389 = vmatprep.subr.bf16.mxu0 0
        %1390 = vmatpush2.bf16.msra.mxu0 %v1242
        %1391 = vmatprep.subr.bf16.mxu0 0
        %1392 = vmatpush2.bf16.msra.mxu0 %v1241
        %1393 = vmatprep.mubr.bf16.mxu0 %v835
        %1394 = vmatmul.mubr.bf16.gmra.mxu0 %v834
        %v1395 = vpop.f32.mrf.mxu0
        %v1396 = vadd.f32 %v975, %v1395
        %v1397 = vpop.f32.mrf.mxu0
        %v1398 = vpop.f32.mrf.mxu0
        %v1399 = vadd.f32 %v975, %v1398
        %v1400 = vpop.f32.mrf.mxu0
        %1401 = vdwg.mxu0
        %1402 = vmatprep.subr.bf16.mxu0 0
        %1403 = vmatpush1.bf16.msra.mxu0 %v1256
        %1404 = vmatprep.subr.bf16.mxu0 0
        %1405 = vmatpush1.bf16.msra.mxu0 %v1255
        %1406 = vmatprep.subr.bf16.mxu0 0
        %1407 = vmatpush1.bf16.msra.mxu0 %v1254
        %1408 = vmatprep.subr.bf16.mxu0 0
        %1409 = vmatpush1.bf16.msra.mxu0 %v1253
        %1410 = vmatprep.subr.bf16.mxu0 0
        %1411 = vmatpush1.bf16.msra.mxu0 %v1252
        %1412 = vmatprep.subr.bf16.mxu0 0
        %1413 = vmatpush1.bf16.msra.mxu0 %v1251
        %1414 = vmatprep.subr.bf16.mxu0 0
        %1415 = vmatpush1.bf16.msra.mxu0 %v1250
        %1416 = vmatprep.subr.bf16.mxu0 0
        %1417 = vmatpush1.bf16.msra.mxu0 %v1249
        %1418 = vmatprep.subr.bf16.mxu0 0
        %1419 = vmatpush2.bf16.msra.mxu0 %v1264
        %1420 = vmatprep.subr.bf16.mxu0 0
        %1421 = vmatpush2.bf16.msra.mxu0 %v1263
        %1422 = vmatprep.subr.bf16.mxu0 0
        %1423 = vmatpush2.bf16.msra.mxu0 %v1262
        %1424 = vmatprep.subr.bf16.mxu0 0
        %1425 = vmatpush2.bf16.msra.mxu0 %v1261
        %1426 = vmatprep.subr.bf16.mxu0 0
        %1427 = vmatpush2.bf16.msra.mxu0 %v1260
        %1428 = vmatprep.subr.bf16.mxu0 0
        %1429 = vmatpush2.bf16.msra.mxu0 %v1259
        %1430 = vmatprep.subr.bf16.mxu0 0
        %1431 = vmatpush2.bf16.msra.mxu0 %v1258
        %1432 = vmatprep.subr.bf16.mxu0 0
        %1433 = vmatpush2.bf16.msra.mxu0 %v1257
        %1434 = vmatprep.mubr.bf16.mxu0 %v837
        %1435 = vmatmul.mubr.bf16.gmra.mxu0 %v836
        %v1436 = vpop.f32.mrf.mxu0
        %v1437 = vadd.f32 %v1396, %v1436
        %v1438 = vpop.f32.mrf.mxu0
        %v1439 = vpop.f32.mrf.mxu0
        %v1440 = vadd.f32 %v1399, %v1439
        %v1441 = vpop.f32.mrf.mxu0
        %1442 = vdwg.mxu0
        %1443 = vmatprep.subr.bf16.mxu0 0
        %1444 = vmatpush1.bf16.msra.mxu0 %v1272
        %1445 = vmatprep.subr.bf16.mxu0 0
        %1446 = vmatpush1.bf16.msra.mxu0 %v1271
        %1447 = vmatprep.subr.bf16.mxu0 0
        %1448 = vmatpush1.bf16.msra.mxu0 %v1270
        %1449 = vmatprep.subr.bf16.mxu0 0
        %1450 = vmatpush1.bf16.msra.mxu0 %v1269
        %1451 = vmatprep.subr.bf16.mxu0 0
        %1452 = vmatpush1.bf16.msra.mxu0 %v1268
        %1453 = vmatprep.subr.bf16.mxu0 0
        %1454 = vmatpush1.bf16.msra.mxu0 %v1267
        %1455 = vmatprep.subr.bf16.mxu0 0
        %1456 = vmatpush1.bf16.msra.mxu0 %v1266
        %1457 = vmatprep.subr.bf16.mxu0 0
        %1458 = vmatpush1.bf16.msra.mxu0 %v1265
        %1459 = vmatprep.subr.bf16.mxu0 0
        %1460 = vmatpush2.bf16.msra.mxu0 %v1280
        %1461 = vmatprep.subr.bf16.mxu0 0
        %1462 = vmatpush2.bf16.msra.mxu0 %v1279
        %1463 = vmatprep.subr.bf16.mxu0 0
        %1464 = vmatpush2.bf16.msra.mxu0 %v1278
        %1465 = vmatprep.subr.bf16.mxu0 0
        %1466 = vmatpush2.bf16.msra.mxu0 %v1277
        %1467 = vmatprep.subr.bf16.mxu0 0
        %1468 = vmatpush2.bf16.msra.mxu0 %v1276
        %1469 = vmatprep.subr.bf16.mxu0 0
        %1470 = vmatpush2.bf16.msra.mxu0 %v1275
        %1471 = vmatprep.subr.bf16.mxu0 0
        %1472 = vmatpush2.bf16.msra.mxu0 %v1274
        %1473 = vmatprep.subr.bf16.mxu0 0
        %1474 = vmatpush2.bf16.msra.mxu0 %v1273
        %1475 = vmatprep.mubr.bf16.mxu0 %v839
        %1476 = vmatmul.mubr.bf16.gmra.mxu0 %v838
        %v1477 = vpop.f32.mrf.mxu0
        %v1478 = vadd.f32 %v1437, %v1477
        %v1479 = vpop.f32.mrf.mxu0
        %v1480 = vpop.f32.mrf.mxu0
        %v1481 = vadd.f32 %v1440, %v1480
        %v1482 = vpop.f32.mrf.mxu0
        %1483 = vdwg.mxu0
        %1484 = vmatprep.subr.bf16.mxu0 0
        %1485 = vmatpush1.bf16.msra.mxu0 %v1288
        %1486 = vmatprep.subr.bf16.mxu0 0
        %1487 = vmatpush1.bf16.msra.mxu0 %v1287
        %1488 = vmatprep.subr.bf16.mxu0 0
        %1489 = vmatpush1.bf16.msra.mxu0 %v1286
        %1490 = vmatprep.subr.bf16.mxu0 0
        %1491 = vmatpush1.bf16.msra.mxu0 %v1285
        %1492 = vmatprep.subr.bf16.mxu0 0
        %1493 = vmatpush1.bf16.msra.mxu0 %v1284
        %1494 = vmatprep.subr.bf16.mxu0 0
        %1495 = vmatpush1.bf16.msra.mxu0 %v1283
        %1496 = vmatprep.subr.bf16.mxu0 0
        %1497 = vmatpush1.bf16.msra.mxu0 %v1282
        %1498 = vmatprep.subr.bf16.mxu0 0
        %1499 = vmatpush1.bf16.msra.mxu0 %v1281
        %1500 = vmatprep.subr.bf16.mxu0 0
        %1501 = vmatpush2.bf16.msra.mxu0 %v1296
        %1502 = vmatprep.subr.bf16.mxu0 0
        %1503 = vmatpush2.bf16.msra.mxu0 %v1295
        %1504 = vmatprep.subr.bf16.mxu0 0
        %1505 = vmatpush2.bf16.msra.mxu0 %v1294
        %1506 = vmatprep.subr.bf16.mxu0 0
        %1507 = vmatpush2.bf16.msra.mxu0 %v1293
        %1508 = vmatprep.subr.bf16.mxu0 0
        %1509 = vmatpush2.bf16.msra.mxu0 %v1292
        %1510 = vmatprep.subr.bf16.mxu0 0
        %1511 = vmatpush2.bf16.msra.mxu0 %v1291
        %1512 = vmatprep.subr.bf16.mxu0 0
        %1513 = vmatpush2.bf16.msra.mxu0 %v1290
        %1514 = vmatprep.subr.bf16.mxu0 0
        %1515 = vmatpush2.bf16.msra.mxu0 %v1289
        %1516 = vmatprep.mubr.bf16.mxu0 %v841
        %1517 = vmatmul.mubr.bf16.gmra.mxu0 %v840
        %v1518 = vpop.f32.mrf.mxu0
        %v1519 = vadd.f32 %v1478, %v1518
        %v1520 = vpop.f32.mrf.mxu0
        %v1521 = vpop.f32.mrf.mxu0
        %v1522 = vadd.f32 %v1481, %v1521
        %v1523 = vpop.f32.mrf.mxu0
        %1524 = vdwg.mxu0
        %vm1525 = vcmp.gt.f32.partialorder %v1519, 0.0
        %vm1526 = vcmp.gt.f32.partialorder %v1522, 0.0
        %v1527 = vmul.f32 %v1519, 0.01
        %v1528 = vmul.f32 %v1522, 0.01
        %v1529 = vsel %vm1525, %v1519, %v1527
        %v1530 = vsel %vm1526, %v1522, %v1528
        %v1531 = vpack.c.bf16 %v1530, %v1529
        %v1532 = vld [vmem:[%s5] sm:$0xf]
        %v1533 = vld [vmem:[%s5 + $0x4] sm:$0xf]
        %v1534 = vld [vmem:[%s5 + $0x8] sm:$0xf]
        %v1535 = vld [vmem:[%s5 + $0xc] sm:$0xf]
        %v1536 = vld [vmem:[%s5 + $0x10] sm:$0xf]
        %v1537 = vld [vmem:[%s5 + $0x14] sm:$0xf]
        %v1538 = vld [vmem:[%s5 + $0x18] sm:$0xf]
        %v1539 = vld [vmem:[%s5 + $0x1c] sm:$0xf]
        %v1540 = vld [vmem:[%s5 + $0x20] sm:$0xf]
        %v1541 = vld [vmem:[%s5 + $0x24] sm:$0xf]
        %v1542 = vld [vmem:[%s5 + $0x28] sm:$0xf]
        %v1543 = vld [vmem:[%s5 + $0x2c] sm:$0xf]
        %v1544 = vld [vmem:[%s5 + $0x30] sm:$0xf]
        %v1545 = vld [vmem:[%s5 + $0x34] sm:$0xf]
        %v1546 = vld [vmem:[%s5 + $0x38] sm:$0xf]
        %v1547 = vld [vmem:[%s5 + $0x3c] sm:$0xf]
        %v1548 = vld [vmem:[%s6] sm:$0x1]
        %v1550 = vlaneseq
        %v1551 = vshrl.u32 %v1550, 7
        %v1552 = vsub.s32 0, %v1551
        %v1553 = vrot.slane %v1548, %v1552
        %v1571 = vunpack.c.l.b16 %v1532
        %v1572 = vunpack.c.l.b16 %v1533
        %v1573 = vunpack.c.l.b16 %v1534
        %v1574 = vunpack.c.l.b16 %v1535
        %v1575 = vunpack.c.l.b16 %v1536
        %v1576 = vunpack.c.l.b16 %v1537
        %v1577 = vunpack.c.l.b16 %v1538
        %v1578 = vunpack.c.l.b16 %v1539
        %v1579 = vunpack.c.l.b16 %v1540
        %v1580 = vunpack.c.l.b16 %v1541
        %v1581 = vunpack.c.l.b16 %v1542
        %v1582 = vunpack.c.l.b16 %v1543
        %v1583 = vunpack.c.l.b16 %v1544
        %v1584 = vunpack.c.l.b16 %v1545
        %v1585 = vunpack.c.l.b16 %v1546
        %v1586 = vunpack.c.l.b16 %v1547
        %v1587 = vpack.c.b16 %v1572, %v1571
        %v1588 = vpack.c.b16 %v1574, %v1573
        %v1589 = vpack.c.b16 %v1576, %v1575
        %v1590 = vpack.c.b16 %v1578, %v1577
        %v1591 = vpack.c.b16 %v1580, %v1579
        %v1592 = vpack.c.b16 %v1582, %v1581
        %v1593 = vpack.c.b16 %v1584, %v1583
        %v1594 = vpack.c.b16 %v1586, %v1585
        %1603 = vmatprep.subr.bf16.mxu0 0
        %1604 = vmatpush1.bf16.msra.mxu0 %v1594
        %1605 = vmatprep.subr.bf16.mxu0 0
        %1606 = vmatpush1.bf16.msra.mxu0 %v1593
        %1607 = vmatprep.subr.bf16.mxu0 0
        %1608 = vmatpush1.bf16.msra.mxu0 %v1592
        %1609 = vmatprep.subr.bf16.mxu0 0
        %1610 = vmatpush1.bf16.msra.mxu0 %v1591
        %1611 = vmatprep.subr.bf16.mxu0 0
        %1612 = vmatpush1.bf16.msra.mxu0 %v1590
        %1613 = vmatprep.subr.bf16.mxu0 0
        %1614 = vmatpush1.bf16.msra.mxu0 %v1589
        %1615 = vmatprep.subr.bf16.mxu0 0
        %1616 = vmatpush1.bf16.msra.mxu0 %v1588
        %1617 = vmatprep.subr.bf16.mxu0 0
        %1618 = vmatpush1.bf16.msra.mxu0 %v1587
        %1619 = vmatprep.subr.bf16.mxu0 0
        %1620 = vmatpush2.bf16.msra.mxu0 0
        %1621 = vmatprep.subr.bf16.mxu0 0
        %1622 = vmatpush2.bf16.msra.mxu0 0
        %1623 = vmatprep.subr.bf16.mxu0 0
        %1624 = vmatpush2.bf16.msra.mxu0 0
        %1625 = vmatprep.subr.bf16.mxu0 0
        %1626 = vmatpush2.bf16.msra.mxu0 0
        %1627 = vmatprep.subr.bf16.mxu0 0
        %1628 = vmatpush2.bf16.msra.mxu0 0
        %1629 = vmatprep.subr.bf16.mxu0 0
        %1630 = vmatpush2.bf16.msra.mxu0 0
        %1631 = vmatprep.subr.bf16.mxu0 0
        %1632 = vmatpush2.bf16.msra.mxu0 0
        %1633 = vmatprep.subr.bf16.mxu0 0
        %1634 = vmatpush2.bf16.msra.mxu0 0
        %1635 = vmatprep.mubr.bf16.mxu0 0
        %1636 = vmatmul.mubr.bf16.gmra.mxu0 %v1531
        %v1637 = vpop.f32.mrf.mxu0
        %v1638 = vadd.f32 %v1553, %v1637
        %v1639 = vpop.f32.mrf.mxu0
        %v1640 = vpop.f32.mrf.mxu0
        %v1641 = vadd.f32 %v1553, %v1640
        %v1642 = vpop.f32.mrf.mxu0
        %1643 = vdwg.mxu0
        %vm1644 = vcmp.gt.f32.partialorder %v1638, 0.0
        %vm1645 = vcmp.gt.f32.partialorder %v1641, 0.0
        %v1646 = vmul.f32 %v1638, 0.01
        %v1647 = vmul.f32 %v1641, 0.01
        %v1648 = vsel %vm1644, %v1638, %v1646
        %v1649 = vsel %vm1645, %v1641, %v1647
        %v1650 = vld [vmem:[%s7] sm:$0x1]
        %v1652 = vlaneseq
        %v1653 = vshrl.u32 %v1652, 7
        %v1654 = vsub.s32 0, %v1653
        %v1655 = vrot.slane %v1650, %v1654
        %v1657 = vmul.f32 %v1648, %v1655
        %v1658 = vmul.f32 %v1649, %v1655
        %vm1659 = vcmask 130048
        %v1660 = vsel %vm1659, %v1657, 0.0
        %1661 = vadd.xlane.f32.xlu0 %v1660
        %v1662 = vpop.xlane.xlu0 %1661
        %v1663 = vsel %vm1659, %v1658, 0.0
        %1664 = vadd.xlane.f32.xlu0 %v1663
        %v1665 = vpop.xlane.xlu0 %1664
        %v1666 = vld [vmem:[#allocation2] sm:$0x1]
        %v1668 = vlaneseq
        %v1669 = vshrl.u32 %v1668, 7
        %v1670 = vsub.s32 0, %v1669
        %v1671 = vrot.slane %v1666, %v1670
        %v1673 = vadd.f32 %v1662, %v1671
        %v1674 = vadd.f32 %v1665, %v1671
        %v1675 = vsub.f32 0.0, %v1673
        %v1676 = vsub.f32 0.0, %v1674
        %v1677 = vmul.f32 %v1675, 1.442695
        %v1678 = vpow.pop %v1677
        %v1679 = vmul.f32 %v1676, 1.442695
        %v1680 = vpow.pop %v1679
        %v1681 = vadd.f32 %v1678, 1.0
        %v1682 = vadd.f32 %v1680, 1.0
        %v1683 = vrcp.pop %v1681
        %v1684 = vmul.f32 1.0, %v1683
        %v1685 = vrcp.pop %v1682
        %v1686 = vmul.f32 1.0, %v1685
        %vm1687 = vcmask 7168
        %1688 = vst.msk [vmem:[%s366] sm:$0xff] %vm1687, %v1684
        %1689 = vst.msk [vmem:[%s366 + $0x8] sm:$0xff] %vm1687, %v1686
        %s1690 = smul.u32 2, %s24
        %p1691 = scmp.lt.s32.totalorder %s1690, 3
        %s1692 = scalar_select %p1691, %s1690, 3
        %s1693 = smul.addr %s1692, 8
        %s1694 = scalar_lea.vmem %s9, %s1693
        // Predicated region
        $region65: #{tpu_custom_call.1} parent=55 // pred_check
          %p1695 = pneg %p236
        $region66: #{tpu_custom_call.1} parent=55 // pred_check_branch
          %1697 = sbr.rel (%p1695) target = $region68
        $region67: #{tpu_custom_call.1} parent=55 // pred_region
          %s1698 = smul.u32 2, %s24
        $region68: #{tpu_custom_call.1} parent=55 // pred_fallthru
          _
      $region56: #{tpu_custom_call.1} parent=5 // pred_fallthru
        _
      %p1699 = scmp.le.s32.totalorder 2, %s19
      // Predicated region
      $region69: #{tpu_custom_call.1} parent=5 // pred_check
        %p1700 = pneg %p1699
      $region70: #{tpu_custom_call.1} parent=5 // pred_check_branch
        %1702 = sbr.rel (%p1700) target = $region72
      $region71: #{tpu_custom_call.1} parent=5 // pred_region
        %s1703 = ssub.s32 %s19, 2
        // Predicated region
        $region73: #{tpu_custom_call.1} parent=71 // pred_check
          %p1704 = pneg %p242
        $region74: #{tpu_custom_call.1} parent=71 // pred_check_branch
          %1706 = sbr.rel (%p1704) target = $region76
        $region75: #{tpu_custom_call.1} parent=71 // pred_region
          %s1707 = smul.u32 2, %s25
          %p1708 = scmp.lt.s32.totalorder %s1707, 3
          %s1709 = scalar_select %p1708, %s1707, 3
          %s1710 = smul.addr %s1709, 8
          %s1711 = scalar_lea.vmem %s9, %s1710
        $region76: #{tpu_custom_call.1} parent=71 // pred_fallthru
          _
      $region72: #{tpu_custom_call.1} parent=5 // pred_fallthru
        _
    $region6: #{tpu_custom_call.1} parent=1 // loop_footer
      %s23 = sadd.s32 1, %s19
    $region7: #{tpu_custom_call.1} parent=1 // loop_footer_branch
      %18 = sbr.rel target = $region3
    $region8: #{tpu_custom_call.1} parent=1 // loop_exit
      _
    %1712 = vsyncpa [#allocation4], 1
    %s1713 = scalar_lea.sflag [#allocation4], 1
    %1714 = vsyncpa %s1713, 1
    %1715 = vsyncpa [#allocation6], 1

</llo_original>
